<compile_context>
chip_gen: v7x
topology: tpu7x:2x2x1
jax: 0.10.0
libtpu: 0.0.40
codegen_flags: <defaults>
</compile_context>

<pallas_src>
import numpy as np

import jax
import jax.numpy as jnp
from jax.experimental import pallas as pl
from jax.experimental.pallas import tpu as pltpu


def _vmem_limit_bytes(frac=0.7, fallback=48 * 1024 * 1024, cap=96 * 1024 * 1024):
    """Per-generation VMEM budget (v5e/v6e: 128 MiB, v7x: 64 MiB) instead of a fixed cap."""
    try:
        return min(int(pltpu.get_tpu_info().vmem_capacity_bytes * frac), cap)
    except Exception:
        return fallback


# ----------------------------- 'max' aggregation kernel -----------------------------
def max_aggr_kernel(mask_t_ref, feat_ref, wt_ref, b_ref, o_ref, acc_ref):
    # mask_t_ref : [TV, NQ]  f32 {0,1} adjacency (neighbor-major), restricted to union
    # feat_ref   : [TV, D]   bf16 neighbor-feature tile (streamed over the reduction axis)
    # wt_ref     : [D,  TO]  bf16 linear-weight column block (resident across reduction)
    # b_ref      : [1,  TO]  f32 bias column block (resident)
    # o_ref      : [NQ, TO]  pooled output block (written once, on the last neighbor tile)
    # acc_ref    : [NQ, TO]  f32 running-max accumulator (VMEM scratch)
    j = pl.program_id(1)
    n_query = acc_ref.shape[0]

    @pl.when(j == 0)
    def _init():
        # matches the torch.zeros init: the max is floored at 0
        acc_ref[...] = jnp.zeros_like(acc_ref)

    # bf16 MXU matmul with f32 accumulation, then bias + relu on the VPU.
    emb = jnp.dot(feat_ref[...], wt_ref[...], preferred_element_type=jnp.float32)
    emb = jnp.maximum(emb + b_ref[...], 0.0)                      # [TV, TO] f32

    mask_t = mask_t_ref[...]                                      # [TV, NQ] f32 {0,1}

    # Masked max-pool over this neighbor tile.  NQ is small and static, so the q loop
    # unrolls; partial rows are collected and folded into the accumulator with ONE
    # full-tile max + store per grid step (no per-query sublane-masked RMW chain).
    parts = []
    for q in range(n_query):
        m_col = mask_t[:, q:q + 1]                                # [TV, 1]
        parts.append(jnp.max(m_col * emb, axis=0, keepdims=True))  # [1, TO]
    parts = jnp.concatenate(parts, axis=0)                        # [NQ, TO]
    acc_ref[...] = jnp.maximum(acc_ref[...], parts)

    @pl.when(j == pl.num_programs(1) - 1)
    def _finalize():
        o_ref[...] = acc_ref[...].astype(o_ref.dtype)


def aggrator_max_forward(mask, feat_table, weight, bias, *, tile_v=None, tile_o=None):
    """'max' aggregation: out[i] = max_j mask[i,j] * relu(feat[j] @ W.T + b), floored at 0.

    `mask` / `feat_table` are already compacted to the sampled union (zero-padded)."""
    n, v = mask.shape
    vv, d = feat_table.shape
    o = weight.shape[0]
    assert vv == v and weight.shape[1] == d

    # Reduction (neighbor) tiling: a single step for small compacted unions; 512-wide
    # streamed tiles for big graphs (amortizes per-grid-step overhead, ~HBM roofline).
    if tile_v is None:
        tile_v = v if v <= 1024 else 512
    assert v % tile_v == 0, "neighbor axis must be padded to a multiple of tile_v"

    # Parallel output-column tiling: two blocks when out_dim allows it so the v7x
    # megacore shards across both TensorCores; size-1 (harmless) axis otherwise.
    if tile_o is None:
        tile_o = (o // 2) if (o % 256 == 0) else o
    assert o % tile_o == 0

    mask_t = mask.T                                   # [V, NQ] neighbor-major (host glue)
    feat_bf = feat_table.astype(jnp.bfloat16)         # bf16 MXU operands, f32 accumulation
    wt = weight.T.astype(jnp.bfloat16)                # [D, O]
    b2d = bias.reshape(1, o).astype(jnp.float32)      # [1, O]

    grid = (o // tile_o, v // tile_v)                 # (parallel out-cols, reduction tiles)

    return pl.pallas_call(
        max_aggr_kernel,
        out_shape=jax.ShapeDtypeStruct((n, o), jnp.float32),
        grid_spec=pltpu.PrefetchScalarGridSpec(
            num_scalar_prefetch=0,
            grid=grid,
            in_specs=[
                pl.BlockSpec((tile_v, n), lambda p, j: (j, 0)),   # mask (transposed) tile
                pl.BlockSpec((tile_v, d), lambda p, j: (j, 0)),   # feature-table tile
                pl.BlockSpec((d, tile_o), lambda p, j: (0, p)),   # weight cols, resident
                pl.BlockSpec((1, tile_o), lambda p, j: (0, p)),   # bias cols, resident
            ],
            out_specs=pl.BlockSpec((n, tile_o), lambda p, j: (0, p)),
            scratch_shapes=[pltpu.VMEM((n, tile_o), jnp.float32)],
        ),
        compiler_params=pltpu.CompilerParams(
            dimension_semantics=("parallel", "arbitrary"),
            vmem_limit_bytes=_vmem_limit_bytes(),
        ),
    )(mask_t, feat_bf, wt, b2d)


# ----------------------------- 'mean' aggregation kernel ----------------------------
def mean_aggr_kernel(mask_ref, feat_ref, o_ref):
    # mask_ref : [TQ, V]  bf16 {0,1} adjacency restricted to the sampled union (exact)
    # feat_ref : [V,  D]  bf16 candidate-neighbor features (resident)
    # o_ref    : [TQ, D]  f32
    m = mask_ref[...]
    s = jnp.dot(m, feat_ref[...], preferred_element_type=jnp.float32)   # bf16 MXU, f32 acc
    deg = jnp.sum(m.astype(jnp.float32), axis=1, keepdims=True)         # [TQ, 1], exact
    # NB: like the PyTorch module, no epsilon guard -- the demo graph guarantees deg >= 1.
    o_ref[...] = (s * pl.reciprocal(deg, approx=True)).astype(o_ref.dtype)


def aggrator_mean_forward(mask, feat_table, *, tile_q=None):
    """'mean' aggregation: out = (mask @ feats) / mask.sum(1, keepdims=True)."""
    n, v = mask.shape
    vv, d = feat_table.shape
    assert vv == v
    # Large query tiles fill the MXU (256 rows matches the v6e/v7x 2x256^2 MXU) and
    # remove per-grid-step overhead; small batches run in a single grid step.
    if tile_q is None:
        tile_q = n if n <= 256 else 256
    assert n % tile_q == 0, "query batch must be padded to a multiple of tile_q"
    grid = (n // tile_q,)

    mask_bf = mask.astype(jnp.bfloat16)               # {0,1} exact in bf16
    feat_bf = feat_table.astype(jnp.bfloat16)

    return pl.pallas_call(
        mean_aggr_kernel,
        out_shape=jax.ShapeDtypeStruct((n, d), jnp.float32),
        grid_spec=pltpu.PrefetchScalarGridSpec(
            num_scalar_prefetch=0,
            grid=grid,
            in_specs=[
                pl.BlockSpec((tile_q, v), lambda i: (i, 0)),      # query-row tile of mask
                pl.BlockSpec((v, d), lambda i: (0, 0)),           # feature table, resident
            ],
            out_specs=pl.BlockSpec((tile_q, d), lambda i: (i, 0)),
        ),
        compiler_params=pltpu.CompilerParams(
            dimension_semantics=("parallel",),                    # independent query rows
            vmem_limit_bytes=_vmem_limit_bytes(),
        ),
    )(mask_bf, feat_bf)


# ------------------ host-side sampling glue (nonzero / randperm / unique) ------------
def sample_neighbor_union(adj_np, nodes_index, number_samp, seed=0):
    """Mirrors the module's per-node random neighbor sampling + torch.unique union.
    Returns the sorted union of sampled neighbor indices."""
    rng = np.random.default_rng(seed)
    chosen = []
    for idx in nodes_index:
        neigh = np.flatnonzero(adj_np[idx] > 0)
        if neigh.size >= number_samp:
            neigh = neigh[rng.permutation(neigh.size)[:number_samp]]
        chosen.append(neigh)
    return np.unique(np.concatenate(chosen))


def compact_candidates(adj_np, feat_np, nodes_index, union, pad_to=128):
    """Gather mask columns / feature rows down to the sampled union and zero-pad the
    union axis to a lane-friendly multiple (padded rows/cols contribute nothing:
    mask is 0 there, so they are masked out of both the max and the mean/degree)."""
    u = union.size
    u_pad = max(pad_to, ((u + pad_to - 1) // pad_to) * pad_to)
    mask = np.zeros((len(nodes_index), u_pad), dtype=np.float32)
    mask[:, :u] = adj_np[np.asarray(nodes_index)][:, union]
    feat = np.zeros((u_pad, feat_np.shape[1]), dtype=np.float32)
    feat[:u] = feat_np[union]
    return jnp.asarray(mask), jnp.asarray(feat)


# --------------------------------------- main ----------------------------------------
if __name__ == "__main__":
    key = jax.random.PRNGKey(0)
    k_feat, k_adj, k_w, k_b = jax.random.split(key, 4)

    num_nodes = 256       # total graph nodes
    n_query = 16          # batch of query nodes
    in_dim = 128          # lane-dense feature dims (multiples of 128)
    out_dim = 128         # the module's 'max' path implicitly requires out_dim == in_dim
    number_samp = 10

    # graph data
    feat_table = jax.random.normal(k_feat, (num_nodes, in_dim), dtype=jnp.float32)
    adj = (jax.random.uniform(k_adj, (num_nodes, num_nodes)) < 0.05).astype(jnp.float32)
    ring = (jnp.eye(num_nodes, k=1) + jnp.eye(num_nodes, k=-(num_nodes - 1))).astype(jnp.float32)
    adj = jnp.maximum(adj, ring)                                  # every node has >= 1 neighbor
    adj = adj * (1.0 - jnp.eye(num_nodes, dtype=jnp.float32))     # no self loops
    nodes_index = np.arange(n_query, dtype=np.int64)

    # linear params (torch.nn.Linear default init: U(-1/sqrt(in_dim), 1/sqrt(in_dim)))
    bound = 1.0 / (in_dim ** 0.5)
    weight = jax.random.uniform(k_w, (out_dim, in_dim), minval=-bound, maxval=bound,
                                dtype=jnp.float32)
    bias = jax.random.uniform(k_b, (out_dim,), minval=-bound, maxval=bound,
                              dtype=jnp.float32)

    # step 1/2 (host glue): random neighbor sampling -> union -> compacted dense mask/feats
    adj_np = np.asarray(adj)
    feat_np = np.asarray(feat_table)
    union = sample_neighbor_union(adj_np, nodes_index, number_samp, seed=0)
    mask, feat_u = compact_candidates(adj_np, feat_np, nodes_index, union, pad_to=128)

    # references computed with the same bf16-cast operands the kernels feed the MXU
    feat_u32 = feat_u.astype(jnp.bfloat16).astype(jnp.float32)
    w32 = weight.astype(jnp.bfloat16).astype(jnp.float32)

    # --- 'max' aggregation (module default) ---
    out_max = jax.block_until_ready(aggrator_max_forward(mask, feat_u, weight, bias))
    emb_ref = jnp.maximum(feat_u32 @ w32.T + bias, 0.0)                           # [U, O]
    ref_max = jnp.max(jnp.where(mask[:, :, None] > 0, emb_ref[None, :, :], 0.0), axis=1)
    assert out_max.shape == (n_query, out_dim)
    assert jnp.allclose(out_max, ref_max, atol=2e-3, rtol=2e-3), "max-aggregation mismatch"

    # --- 'mean' aggregation ---
    out_mean = jax.block_until_ready(aggrator_mean_forward(mask, feat_u))
    ref_mean = (mask @ feat_u32) / jnp.sum(mask, axis=1, keepdims=True)
    assert out_mean.shape == (n_query, in_dim)
    assert jnp.allclose(out_mean, ref_mean, atol=2e-3, rtol=2e-3), "mean-aggregation mismatch"

    print("KERNEL_OK")
</pallas_src>

<mosaic_0001>
module attributes {stable_mosaic.version = 11 : i64} {
  func.func @max_aggr_kernel(%arg0: i32, %arg1: i32, %arg2: memref<128x16xf32, #tpu.memory_space<vmem>>, %arg3: memref<128x128xbf16, #tpu.memory_space<vmem>>, %arg4: memref<128x128xbf16, #tpu.memory_space<vmem>>, %arg5: memref<1x128xf32, #tpu.memory_space<vmem>>, %arg6: memref<16x128xf32, #tpu.memory_space<vmem>>, %arg7: memref<16x128xf32, #tpu.memory_space<vmem>>) attributes {dimension_semantics = [#tpu.dimension_semantics<parallel>, #tpu.dimension_semantics<arbitrary>], iteration_bounds = array<i64: 1, 1>, scalar_prefetch = 0 : i64, scratch_operands = 1 : i64, tpu.core_type = #tpu.core_type<tc>, window_params = [{transform_indices = @transform_0, window_bounds = array<i64: 128, 16>}, {transform_indices = @transform_1, window_bounds = array<i64: 128, 128>}, {transform_indices = @transform_2, window_bounds = array<i64: 128, 128>}, {transform_indices = @transform_3, window_bounds = array<i64: 1, 128>}, {transform_indices = @transform_4, window_bounds = array<i64: 16, 128>}]} {
    %c0_i32 = arith.constant 0 : i32
    %0 = arith.cmpi eq, %arg1, %c0_i32 : i32
    %1 = arith.extui %0 : i1 to i32
    %c0_i32_0 = arith.constant 0 : i32
    %2 = arith.cmpi ne, %1, %c0_i32_0 : i32
    scf.if %2 {
      %cst_31 = arith.constant 0.000000e+00 : f32
      %99 = vector.broadcast %cst_31 : f32 to vector<16x128xf32>
      %c0_32 = arith.constant 0 : index
      %c0_33 = arith.constant 0 : index
      %100 = vector.load %arg7[%c0_32, %c0_33] : memref<16x128xf32, #tpu.memory_space<vmem>>, vector<16x128xf32>
      tpu.vector_store %arg7[%c0_32, %c0_33], %99 {strides = array<i32>} : memref<16x128xf32, #tpu.memory_space<vmem>>, vector<16x128xf32>,
    } else {
    }
    %c0 = arith.constant 0 : index
    %c0_1 = arith.constant 0 : index
    %3 = vector.load %arg3[%c0, %c0_1] : memref<128x128xbf16, #tpu.memory_space<vmem>>, vector<128x128xbf16>
    %c0_2 = arith.constant 0 : index
    %c0_3 = arith.constant 0 : index
    %4 = vector.load %arg4[%c0_2, %c0_3] : memref<128x128xbf16, #tpu.memory_space<vmem>>, vector<128x128xbf16>
    %cst = arith.constant dense<0.000000e+00> : vector<128x128xf32>
    %5 = tpu.matmul %3, %4, %cst {dimension_numbers = #tpu.dot_dimension_numbers<[1], [0], [0], [1], [0, 0, 1, 1], [], []>} : vector<128x128xbf16>, vector<128x128xbf16>, vector<128x128xf32> -> vector<128x128xf32>
    %c0_4 = arith.constant 0 : index
    %c0_5 = arith.constant 0 : index
    %6 = vector.load %arg5[%c0_4, %c0_5] : memref<1x128xf32, #tpu.memory_space<vmem>>, vector<1x128xf32>
    %7 = vector.broadcast %6 : vector<1x128xf32> to vector<128x128xf32>
    %8 = arith.addf %5, %7 : vector<128x128xf32>
    %cst_6 = arith.constant 0.000000e+00 : f32
    %9 = vector.broadcast %cst_6 : f32 to vector<128x128xf32>
    %10 = arith.maximumf %8, %9 : vector<128x128xf32>
    %c0_7 = arith.constant 0 : index
    %c0_8 = arith.constant 0 : index
    %11 = vector.load %arg2[%c0_7, %c0_8] : memref<128x16xf32, #tpu.memory_space<vmem>>, vector<128x16xf32>
    %12 = vector.extract_strided_slice %11 {offsets = [0, 0], sizes = [128, 1], strides = [1, 1]} : vector<128x16xf32> to vector<128x1xf32>
    %13 = vector.broadcast %12 : vector<128x1xf32> to vector<128x128xf32>
    %14 = arith.mulf %13, %10 : vector<128x128xf32>
    %cst_9 = arith.constant dense<0xFF800000> : vector<128xf32>
    %15 = vector.multi_reduction <maximumf>, %14, %cst_9 [0] : vector<128x128xf32> to vector<128xf32>
    %16 = vector.shape_cast %15 : vector<128xf32> to vector<1x128xf32>
    %17 = vector.extract_strided_slice %11 {offsets = [0, 1], sizes = [128, 1], strides = [1, 1]} : vector<128x16xf32> to vector<128x1xf32>
    %18 = vector.broadcast %17 : vector<128x1xf32> to vector<128x128xf32>
    %19 = arith.mulf %18, %10 : vector<128x128xf32>
    %cst_10 = arith.constant dense<0xFF800000> : vector<128xf32>
    %20 = vector.multi_reduction <maximumf>, %19, %cst_10 [0] : vector<128x128xf32> to vector<128xf32>
    %21 = vector.shape_cast %20 : vector<128xf32> to vector<1x128xf32>
    %22 = vector.extract_strided_slice %11 {offsets = [0, 2], sizes = [128, 1], strides = [1, 1]} : vector<128x16xf32> to vector<128x1xf32>
    %23 = vector.broadcast %22 : vector<128x1xf32> to vector<128x128xf32>
    %24 = arith.mulf %23, %10 : vector<128x128xf32>
    %cst_11 = arith.constant dense<0xFF800000> : vector<128xf32>
    %25 = vector.multi_reduction <maximumf>, %24, %cst_11 [0] : vector<128x128xf32> to vector<128xf32>
    %26 = vector.shape_cast %25 : vector<128xf32> to vector<1x128xf32>
    %27 = vector.extract_strided_slice %11 {offsets = [0, 3], sizes = [128, 1], strides = [1, 1]} : vector<128x16xf32> to vector<128x1xf32>
    %28 = vector.broadcast %27 : vector<128x1xf32> to vector<128x128xf32>
    %29 = arith.mulf %28, %10 : vector<128x128xf32>
    %cst_12 = arith.constant dense<0xFF800000> : vector<128xf32>
    %30 = vector.multi_reduction <maximumf>, %29, %cst_12 [0] : vector<128x128xf32> to vector<128xf32>
    %31 = vector.shape_cast %30 : vector<128xf32> to vector<1x128xf32>
    %32 = vector.extract_strided_slice %11 {offsets = [0, 4], sizes = [128, 1], strides = [1, 1]} : vector<128x16xf32> to vector<128x1xf32>
    %33 = vector.broadcast %32 : vector<128x1xf32> to vector<128x128xf32>
    %34 = arith.mulf %33, %10 : vector<128x128xf32>
    %cst_13 = arith.constant dense<0xFF800000> : vector<128xf32>
    %35 = vector.multi_reduction <maximumf>, %34, %cst_13 [0] : vector<128x128xf32> to vector<128xf32>
    %36 = vector.shape_cast %35 : vector<128xf32> to vector<1x128xf32>
    %37 = vector.extract_strided_slice %11 {offsets = [0, 5], sizes = [128, 1], strides = [1, 1]} : vector<128x16xf32> to vector<128x1xf32>
    %38 = vector.broadcast %37 : vector<128x1xf32> to vector<128x128xf32>
    %39 = arith.mulf %38, %10 : vector<128x128xf32>
    %cst_14 = arith.constant dense<0xFF800000> : vector<128xf32>
    %40 = vector.multi_reduction <maximumf>, %39, %cst_14 [0] : vector<128x128xf32> to vector<128xf32>
    %41 = vector.shape_cast %40 : vector<128xf32> to vector<1x128xf32>
    %42 = vector.extract_strided_slice %11 {offsets = [0, 6], sizes = [128, 1], strides = [1, 1]} : vector<128x16xf32> to vector<128x1xf32>
    %43 = vector.broadcast %42 : vector<128x1xf32> to vector<128x128xf32>
    %44 = arith.mulf %43, %10 : vector<128x128xf32>
    %cst_15 = arith.constant dense<0xFF800000> : vector<128xf32>
    %45 = vector.multi_reduction <maximumf>, %44, %cst_15 [0] : vector<128x128xf32> to vector<128xf32>
    %46 = vector.shape_cast %45 : vector<128xf32> to vector<1x128xf32>
    %47 = vector.extract_strided_slice %11 {offsets = [0, 7], sizes = [128, 1], strides = [1, 1]} : vector<128x16xf32> to vector<128x1xf32>
    %48 = vector.broadcast %47 : vector<128x1xf32> to vector<128x128xf32>
    %49 = arith.mulf %48, %10 : vector<128x128xf32>
    %cst_16 = arith.constant dense<0xFF800000> : vector<128xf32>
    %50 = vector.multi_reduction <maximumf>, %49, %cst_16 [0] : vector<128x128xf32> to vector<128xf32>
    %51 = vector.shape_cast %50 : vector<128xf32> to vector<1x128xf32>
    %52 = vector.extract_strided_slice %11 {offsets = [0, 8], sizes = [128, 1], strides = [1, 1]} : vector<128x16xf32> to vector<128x1xf32>
    %53 = vector.broadcast %52 : vector<128x1xf32> to vector<128x128xf32>
    %54 = arith.mulf %53, %10 : vector<128x128xf32>
    %cst_17 = arith.constant dense<0xFF800000> : vector<128xf32>
    %55 = vector.multi_reduction <maximumf>, %54, %cst_17 [0] : vector<128x128xf32> to vector<128xf32>
    %56 = vector.shape_cast %55 : vector<128xf32> to vector<1x128xf32>
    %57 = vector.extract_strided_slice %11 {offsets = [0, 9], sizes = [128, 1], strides = [1, 1]} : vector<128x16xf32> to vector<128x1xf32>
    %58 = vector.broadcast %57 : vector<128x1xf32> to vector<128x128xf32>
    %59 = arith.mulf %58, %10 : vector<128x128xf32>
    %cst_18 = arith.constant dense<0xFF800000> : vector<128xf32>
    %60 = vector.multi_reduction <maximumf>, %59, %cst_18 [0] : vector<128x128xf32> to vector<128xf32>
    %61 = vector.shape_cast %60 : vector<128xf32> to vector<1x128xf32>
    %62 = vector.extract_strided_slice %11 {offsets = [0, 10], sizes = [128, 1], strides = [1, 1]} : vector<128x16xf32> to vector<128x1xf32>
    %63 = vector.broadcast %62 : vector<128x1xf32> to vector<128x128xf32>
    %64 = arith.mulf %63, %10 : vector<128x128xf32>
    %cst_19 = arith.constant dense<0xFF800000> : vector<128xf32>
    %65 = vector.multi_reduction <maximumf>, %64, %cst_19 [0] : vector<128x128xf32> to vector<128xf32>
    %66 = vector.shape_cast %65 : vector<128xf32> to vector<1x128xf32>
    %67 = vector.extract_strided_slice %11 {offsets = [0, 11], sizes = [128, 1], strides = [1, 1]} : vector<128x16xf32> to vector<128x1xf32>
    %68 = vector.broadcast %67 : vector<128x1xf32> to vector<128x128xf32>
    %69 = arith.mulf %68, %10 : vector<128x128xf32>
    %cst_20 = arith.constant dense<0xFF800000> : vector<128xf32>
    %70 = vector.multi_reduction <maximumf>, %69, %cst_20 [0] : vector<128x128xf32> to vector<128xf32>
    %71 = vector.shape_cast %70 : vector<128xf32> to vector<1x128xf32>
    %72 = vector.extract_strided_slice %11 {offsets = [0, 12], sizes = [128, 1], strides = [1, 1]} : vector<128x16xf32> to vector<128x1xf32>
    %73 = vector.broadcast %72 : vector<128x1xf32> to vector<128x128xf32>
    %74 = arith.mulf %73, %10 : vector<128x128xf32>
    %cst_21 = arith.constant dense<0xFF800000> : vector<128xf32>
    %75 = vector.multi_reduction <maximumf>, %74, %cst_21 [0] : vector<128x128xf32> to vector<128xf32>
    %76 = vector.shape_cast %75 : vector<128xf32> to vector<1x128xf32>
    %77 = vector.extract_strided_slice %11 {offsets = [0, 13], sizes = [128, 1], strides = [1, 1]} : vector<128x16xf32> to vector<128x1xf32>
    %78 = vector.broadcast %77 : vector<128x1xf32> to vector<128x128xf32>
    %79 = arith.mulf %78, %10 : vector<128x128xf32>
    %cst_22 = arith.constant dense<0xFF800000> : vector<128xf32>
    %80 = vector.multi_reduction <maximumf>, %79, %cst_22 [0] : vector<128x128xf32> to vector<128xf32>
    %81 = vector.shape_cast %80 : vector<128xf32> to vector<1x128xf32>
    %82 = vector.extract_strided_slice %11 {offsets = [0, 14], sizes = [128, 1], strides = [1, 1]} : vector<128x16xf32> to vector<128x1xf32>
    %83 = vector.broadcast %82 : vector<128x1xf32> to vector<128x128xf32>
    %84 = arith.mulf %83, %10 : vector<128x128xf32>
    %cst_23 = arith.constant dense<0xFF800000> : vector<128xf32>
    %85 = vector.multi_reduction <maximumf>, %84, %cst_23 [0] : vector<128x128xf32> to vector<128xf32>
    %86 = vector.shape_cast %85 : vector<128xf32> to vector<1x128xf32>
    %87 = vector.extract_strided_slice %11 {offsets = [0, 15], sizes = [128, 1], strides = [1, 1]} : vector<128x16xf32> to vector<128x1xf32>
    %88 = vector.broadcast %87 : vector<128x1xf32> to vector<128x128xf32>
    %89 = arith.mulf %88, %10 : vector<128x128xf32>
    %cst_24 = arith.constant dense<0xFF800000> : vector<128xf32>
    %90 = vector.multi_reduction <maximumf>, %89, %cst_24 [0] : vector<128x128xf32> to vector<128xf32>
    %91 = vector.shape_cast %90 : vector<128xf32> to vector<1x128xf32>
    %92 = tpu.concatenate %16, %21, %26, %31, %36, %41, %46, %51, %56, %61, %66, %71, %76, %81, %86, %91 in 0 : vector<1x128xf32>, vector<1x128xf32>, vector<1x128xf32>, vector<1x128xf32>, vector<1x128xf32>, vector<1x128xf32>, vector<1x128xf32>, vector<1x128xf32>, vector<1x128xf32>, vector<1x128xf32>, vector<1x128xf32>, vector<1x128xf32>, vector<1x128xf32>, vector<1x128xf32>, vector<1x128xf32>, vector<1x128xf32> -> vector<16x128xf32>
    %c0_25 = arith.constant 0 : index
    %c0_26 = arith.constant 0 : index
    %93 = vector.load %arg7[%c0_25, %c0_26] : memref<16x128xf32, #tpu.memory_space<vmem>>, vector<16x128xf32>
    %94 = arith.maximumf %93, %92 : vector<16x128xf32>
    %c0_27 = arith.constant 0 : index
    %c0_28 = arith.constant 0 : index
    %95 = vector.load %arg7[%c0_27, %c0_28] : memref<16x128xf32, #tpu.memory_space<vmem>>, vector<16x128xf32>
    tpu.vector_store %arg7[%c0_27, %c0_28], %94 {strides = array<i32>} : memref<16x128xf32, #tpu.memory_space<vmem>>, vector<16x128xf32>,
    %c0_i32_29 = arith.constant 0 : i32
    %96 = arith.cmpi eq, %arg1, %c0_i32_29 : i32
    %97 = arith.extui %96 : i1 to i32
    %c0_i32_30 = arith.constant 0 : i32
    %98 = arith.cmpi ne, %97, %c0_i32_30 : i32
    scf.if %98 {
      %c0_31 = arith.constant 0 : index
      %c0_32 = arith.constant 0 : index
      %99 = vector.load %arg7[%c0_31, %c0_32] : memref<16x128xf32, #tpu.memory_space<vmem>>, vector<16x128xf32>
      %c0_33 = arith.constant 0 : index
      %c0_34 = arith.constant 0 : index
      %100 = vector.load %arg6[%c0_33, %c0_34] : memref<16x128xf32, #tpu.memory_space<vmem>>, vector<16x128xf32>
      tpu.vector_store %arg6[%c0_33, %c0_34], %99 {strides = array<i32>} : memref<16x128xf32, #tpu.memory_space<vmem>>, vector<16x128xf32>,
    } else {
    }
    return
  }
  func.func @transform_0(%arg0: i32, %arg1: i32) -> (i32, i32) {
    %c0_i32 = arith.constant 0 : i32
    %c0_i32_0 = arith.constant 0 : i32
    return %arg1, %c0_i32 : i32, i32
  }
  func.func @transform_1(%arg0: i32, %arg1: i32) -> (i32, i32) {
    %c0_i32 = arith.constant 0 : i32
    %c0_i32_0 = arith.constant 0 : i32
    return %arg1, %c0_i32 : i32, i32
  }
  func.func @transform_2(%arg0: i32, %arg1: i32) -> (i32, i32) {
    %c0_i32 = arith.constant 0 : i32
    %c0_i32_0 = arith.constant 0 : i32
    return %c0_i32, %arg0 : i32, i32
  }
  func.func @transform_3(%arg0: i32, %arg1: i32) -> (i32, i32) {
    %c0_i32 = arith.constant 0 : i32
    %c0_i32_0 = arith.constant 0 : i32
    return %c0_i32, %arg0 : i32, i32
  }
  func.func @transform_4(%arg0: i32, %arg1: i32) -> (i32, i32) {
    %c0_i32 = arith.constant 0 : i32
    %c0_i32_0 = arith.constant 0 : i32
    return %c0_i32, %arg0 : i32, i32
  }
}

</mosaic_0001>

<llo_original>
// kernel: tpu_custom_call.1
$region0: #{tpu_custom_call.1}
  #allocation0 [shape = 'u32[]', space=smem, size = 0x4, offset = 0x4, fixed_abs, tag = 'smem constant byte address 0x4 - core index']
  #allocation1 [shape = 'u32[144,128]{1,0:T(1,128)}', space=vmem, size = 0x12000, scoped, tag = 'internal scratch']
  #allocation2 [shape = 'f32[16,128]{1,0:T(8,128)}', space=vmem, size = 0x2000, scoped, tag = 'scratch operand']
  %s0 = inlined_call_operand.vmem [shape: f32[128,16], index: 0, kind: input, shape index: {}]
  %s1 = inlined_call_operand.vmem [shape: bf16[128,128], index: 1, kind: input, shape index: {}]
  %s2 = inlined_call_operand.vmem [shape: bf16[128,128], index: 2, kind: input, shape index: {}]
  %s3 = inlined_call_operand.vmem [shape: f32[1,128], index: 3, kind: input, shape index: {}]
  %s4 = inlined_call_operand.hbm [shape: f32[16,128], index: 4, kind: output, shape index: {}]
  %s5 = sld [smem:[#allocation0]]
  $region34: #{tpu_custom_call.1} parent=0
    _
  %s7 = ssub.s32 1, %s5
  %s8 = scalar_select 0, %s7, %s5
  $region1: #{tpu_custom_call.1} parent=0
    #allocation3 [shape = 'u8[8192]{0}', space=vmem, size = 0x2000, scoped, tag = 'output window, operand 0, single buffered']
    #allocation4 [shape = 's32[1]{0}', space=sflag, size = 0x4, scoped, tag = 'scoped memory for tpu_custom_call.1']
    %9 = vsyncpa [#allocation4], 0
    // Predicated region
    $region2: #{tpu_custom_call.1} parent=1 // pred_check
      _
    $region3: #{tpu_custom_call.1} parent=1 // pred_check_branch
      %11 = sbr.rel (0) target = $region5
    $region4: #{tpu_custom_call.1} parent=1 // pred_region
      _
    $region5: #{tpu_custom_call.1} parent=1 // pred_fallthru
      _
    // Predicated region
    $region6: #{tpu_custom_call.1} parent=1 // pred_check
      _
    $region7: #{tpu_custom_call.1} parent=1 // pred_check_branch
      %13 = sbr.rel (0) target = $region9
    $region8: #{tpu_custom_call.1} parent=1 // pred_region
      _
    $region9: #{tpu_custom_call.1} parent=1 // pred_fallthru
      _
    // Predicated region
    $region10: #{tpu_custom_call.1} parent=1 // pred_check
      _
    $region11: #{tpu_custom_call.1} parent=1 // pred_check_branch
      %15 = sbr.rel (0) target = $region13
    $region12: #{tpu_custom_call.1} parent=1 // pred_region
      _
    $region13: #{tpu_custom_call.1} parent=1 // pred_fallthru
      _
    // Predicated region
    $region14: #{tpu_custom_call.1} parent=1 // pred_check
      _
    $region15: #{tpu_custom_call.1} parent=1 // pred_check_branch
      %17 = sbr.rel (0) target = $region17
    $region16: #{tpu_custom_call.1} parent=1 // pred_region
      _
    $region17: #{tpu_custom_call.1} parent=1 // pred_fallthru
      _
    %p19 = scmp.eq.s32.totalorder 0, 0
    // Predicated region
    $region18: #{tpu_custom_call.1} parent=1 // pred_check
      %p20 = pneg %p19
    $region19: #{tpu_custom_call.1} parent=1 // pred_check_branch
      %22 = sbr.rel (%p20) target = $region21
    $region20: #{tpu_custom_call.1} parent=1 // pred_region
      %23 = vst [vmem:[#allocation2] sm:$0xff] 0.0
      %24 = vst [vmem:[#allocation2 + $0x8] sm:$0xff] 0.0
    $region21: #{tpu_custom_call.1} parent=1 // pred_fallthru
      _
    %v25 = vld [vmem:[%s1] sm:$0xf]
    %v26 = vld [vmem:[%s1 + $0x4] sm:$0xf]
    %v27 = vld [vmem:[%s1 + $0x8] sm:$0xf]
    %v28 = vld [vmem:[%s1 + $0xc] sm:$0xf]
    %v29 = vld [vmem:[%s1 + $0x10] sm:$0xf]
    %v30 = vld [vmem:[%s1 + $0x14] sm:$0xf]
    %v31 = vld [vmem:[%s1 + $0x18] sm:$0xf]
    %v32 = vld [vmem:[%s1 + $0x1c] sm:$0xf]
    %v33 = vld [vmem:[%s1 + $0x20] sm:$0xf]
    %v34 = vld [vmem:[%s1 + $0x24] sm:$0xf]
    %v35 = vld [vmem:[%s1 + $0x28] sm:$0xf]
    %v36 = vld [vmem:[%s1 + $0x2c] sm:$0xf]
    %v37 = vld [vmem:[%s1 + $0x30] sm:$0xf]
    %v38 = vld [vmem:[%s1 + $0x34] sm:$0xf]
    %v39 = vld [vmem:[%s1 + $0x38] sm:$0xf]
    %v40 = vld [vmem:[%s1 + $0x3c] sm:$0xf]
    %v41 = vld [vmem:[%s2] sm:$0xf]
    %v42 = vld [vmem:[%s2 + $0x4] sm:$0xf]
    %v43 = vld [vmem:[%s2 + $0x8] sm:$0xf]
    %v44 = vld [vmem:[%s2 + $0xc] sm:$0xf]
    %v45 = vld [vmem:[%s2 + $0x10] sm:$0xf]
    %v46 = vld [vmem:[%s2 + $0x14] sm:$0xf]
    %v47 = vld [vmem:[%s2 + $0x18] sm:$0xf]
    %v48 = vld [vmem:[%s2 + $0x1c] sm:$0xf]
    %v49 = vld [vmem:[%s2 + $0x20] sm:$0xf]
    %v50 = vld [vmem:[%s2 + $0x24] sm:$0xf]
    %v51 = vld [vmem:[%s2 + $0x28] sm:$0xf]
    %v52 = vld [vmem:[%s2 + $0x2c] sm:$0xf]
    %v53 = vld [vmem:[%s2 + $0x30] sm:$0xf]
    %v54 = vld [vmem:[%s2 + $0x34] sm:$0xf]
    %v55 = vld [vmem:[%s2 + $0x38] sm:$0xf]
    %v56 = vld [vmem:[%s2 + $0x3c] sm:$0xf]
    %v57 = vld [vmem:[%s3] sm:$0x1]
    %v59 = vlaneseq
    %v60 = vshrl.u32 %v59, 7
    %v61 = vsub.s32 0, %v60
    %v62 = vrot.slane %v57, %v61
    %v80 = vunpack.c.l.b16 %v25
    %v81 = vunpack.c.l.b16 %v26
    %v82 = vunpack.c.l.b16 %v27
    %v83 = vunpack.c.l.b16 %v28
    %v84 = vunpack.c.l.b16 %v29
    %v85 = vunpack.c.l.b16 %v30
    %v86 = vunpack.c.l.b16 %v31
    %v87 = vunpack.c.l.b16 %v32
    %v88 = vunpack.c.l.b16 %v33
    %v89 = vunpack.c.l.b16 %v34
    %v90 = vunpack.c.l.b16 %v35
    %v91 = vunpack.c.l.b16 %v36
    %v92 = vunpack.c.l.b16 %v37
    %v93 = vunpack.c.l.b16 %v38
    %v94 = vunpack.c.l.b16 %v39
    %v95 = vunpack.c.l.b16 %v40
    %v96 = vpack.c.b16 %v81, %v80
    %v97 = vpack.c.b16 %v83, %v82
    %v98 = vpack.c.b16 %v85, %v84
    %v99 = vpack.c.b16 %v87, %v86
    %v100 = vpack.c.b16 %v89, %v88
    %v101 = vpack.c.b16 %v91, %v90
    %v102 = vpack.c.b16 %v93, %v92
    %v103 = vpack.c.b16 %v95, %v94
    %v128 = vunpack.c.l.b16 %v41
    %v129 = vunpack.c.l.b16 %v42
    %v130 = vunpack.c.l.b16 %v43
    %v131 = vunpack.c.l.b16 %v44
    %v132 = vunpack.c.l.b16 %v45
    %v133 = vunpack.c.l.b16 %v46
    %v134 = vunpack.c.l.b16 %v47
    %v135 = vunpack.c.l.b16 %v48
    %v136 = vunpack.c.l.b16 %v49
    %v137 = vunpack.c.l.b16 %v50
    %v138 = vunpack.c.l.b16 %v51
    %v139 = vunpack.c.l.b16 %v52
    %v140 = vunpack.c.l.b16 %v53
    %v141 = vunpack.c.l.b16 %v54
    %v142 = vunpack.c.l.b16 %v55
    %v143 = vunpack.c.l.b16 %v56
    %v144 = vpack.c.b16 %v129, %v128
    %v145 = vpack.c.b16 %v131, %v130
    %v146 = vpack.c.b16 %v133, %v132
    %v147 = vpack.c.b16 %v135, %v134
    %v148 = vpack.c.b16 %v137, %v136
    %v149 = vpack.c.b16 %v139, %v138
    %v150 = vpack.c.b16 %v141, %v140
    %v151 = vpack.c.b16 %v143, %v142
    %160 = vmatprep.subr.bf16.mxu0 0
    %161 = vmatpush1.bf16.msra.mxu0 %v144
    %162 = vmatprep.subr.bf16.mxu0 0
    %163 = vmatpush1.bf16.msra.mxu0 %v145
    %164 = vmatprep.subr.bf16.mxu0 0
    %165 = vmatpush1.bf16.msra.mxu0 %v146
    %166 = vmatprep.subr.bf16.mxu0 0
    %167 = vmatpush1.bf16.msra.mxu0 %v147
    %168 = vmatprep.subr.bf16.mxu0 0
    %169 = vmatpush1.bf16.msra.mxu0 %v148
    %170 = vmatprep.subr.bf16.mxu0 0
    %171 = vmatpush1.bf16.msra.mxu0 %v149
    %172 = vmatprep.subr.bf16.mxu0 0
    %173 = vmatpush1.bf16.msra.mxu0 %v150
    %174 = vmatprep.subr.bf16.mxu0 0
    %175 = vmatpush1.bf16.msra.mxu0 %v151
    %176 = vmatprep.subr.bf16.mxu0 0
    %177 = vmatpush1.bf16.msra.mxu0 0
    %178 = vmatprep.subr.bf16.mxu0 0
    %179 = vmatpush1.bf16.msra.mxu0 0
    %180 = vmatprep.subr.bf16.mxu0 0
    %181 = vmatpush1.bf16.msra.mxu0 0
    %182 = vmatprep.subr.bf16.mxu0 0
    %183 = vmatpush1.bf16.msra.mxu0 0
    %184 = vmatprep.subr.bf16.mxu0 0
    %185 = vmatpush1.bf16.msra.mxu0 0
    %186 = vmatprep.subr.bf16.mxu0 0
    %187 = vmatpush1.bf16.msra.mxu0 0
    %188 = vmatprep.subr.bf16.mxu0 0
    %189 = vmatpush1.bf16.msra.mxu0 0
    %190 = vmatprep.subr.bf16.mxu0 0
    %191 = vmatpush1.bf16.msra.mxu0 0
    %192 = vmatprep.mubr.bf16.mxu0 0
    %193 = vmatmul.mubr.bf16.gmra.mrb[0].mxu0 %v96
    %v194 = vpop.f32.mrb[0].mxu0
    %v195 = vadd.f32 %v62, %v194
    %v196 = vpop.f32.mrb[0].mxu0
    %v197 = vpop.f32.mrb[0].mxu0
    %v198 = vadd.f32 %v62, %v197
    %v199 = vpop.f32.mrb[0].mxu0
    %200 = vmatprep.mubr.bf16.mxu0 0
    %201 = vmatmul.mubr.bf16.gmra.mrb[0].mxu0 %v97
    %v202 = vpop.f32.mrb[0].mxu0
    %v203 = vadd.f32 %v62, %v202
    %v204 = vpop.f32.mrb[0].mxu0
    %v205 = vpop.f32.mrb[0].mxu0
    %v206 = vadd.f32 %v62, %v205
    %v207 = vpop.f32.mrb[0].mxu0
    %208 = vmatprep.mubr.bf16.mxu0 0
    %209 = vmatmul.mubr.bf16.gmra.mrb[0].mxu0 %v98
    %v210 = vpop.f32.mrb[0].mxu0
    %v211 = vadd.f32 %v62, %v210
    %v212 = vpop.f32.mrb[0].mxu0
    %v213 = vpop.f32.mrb[0].mxu0
    %v214 = vadd.f32 %v62, %v213
    %v215 = vpop.f32.mrb[0].mxu0
    %216 = vmatprep.mubr.bf16.mxu0 0
    %217 = vmatmul.mubr.bf16.gmra.mrb[0].mxu0 %v99
    %v218 = vpop.f32.mrb[0].mxu0
    %v219 = vadd.f32 %v62, %v218
    %v220 = vpop.f32.mrb[0].mxu0
    %v221 = vpop.f32.mrb[0].mxu0
    %v222 = vadd.f32 %v62, %v221
    %v223 = vpop.f32.mrb[0].mxu0
    %224 = vmatprep.mubr.bf16.mxu0 0
    %225 = vmatmul.mubr.bf16.gmra.mrb[0].mxu0 %v100
    %v226 = vpop.f32.mrb[0].mxu0
    %v227 = vadd.f32 %v62, %v226
    %v228 = vpop.f32.mrb[0].mxu0
    %v229 = vpop.f32.mrb[0].mxu0
    %v230 = vadd.f32 %v62, %v229
    %v231 = vpop.f32.mrb[0].mxu0
    %232 = vmatprep.mubr.bf16.mxu0 0
    %233 = vmatmul.mubr.bf16.gmra.mrb[0].mxu0 %v101
    %v234 = vpop.f32.mrb[0].mxu0
    %v235 = vadd.f32 %v62, %v234
    %v236 = vpop.f32.mrb[0].mxu0
    %v237 = vpop.f32.mrb[0].mxu0
    %v238 = vadd.f32 %v62, %v237
    %v239 = vpop.f32.mrb[0].mxu0
    %240 = vmatprep.mubr.bf16.mxu0 0
    %241 = vmatmul.mubr.bf16.gmra.mrb[0].mxu0 %v102
    %v242 = vpop.f32.mrb[0].mxu0
    %v243 = vadd.f32 %v62, %v242
    %v244 = vpop.f32.mrb[0].mxu0
    %v245 = vpop.f32.mrb[0].mxu0
    %v246 = vadd.f32 %v62, %v245
    %v247 = vpop.f32.mrb[0].mxu0
    %248 = vmatprep.mubr.bf16.mxu0 0
    %249 = vmatmul.mubr.bf16.gmra.mrb[0].mxu0 %v103
    %v250 = vpop.f32.mrb[0].mxu0
    %v251 = vadd.f32 %v62, %v250
    %v252 = vpop.f32.mrb[0].mxu0
    %v253 = vpop.f32.mrb[0].mxu0
    %v254 = vadd.f32 %v62, %v253
    %v255 = vpop.f32.mrb[0].mxu0
    %256 = vdwg.mxu0
    %v257 = vmax.f32 %v195, 0.0
    %v258 = vmax.f32 %v198, 0.0
    %v259 = vmax.f32 %v203, 0.0
    %v260 = vmax.f32 %v206, 0.0
    %v261 = vmax.f32 %v211, 0.0
    %v262 = vmax.f32 %v214, 0.0
    %v263 = vmax.f32 %v219, 0.0
    %v264 = vmax.f32 %v222, 0.0
    %v265 = vmax.f32 %v227, 0.0
    %v266 = vmax.f32 %v230, 0.0
    %v267 = vmax.f32 %v235, 0.0
    %v268 = vmax.f32 %v238, 0.0
    %v269 = vmax.f32 %v243, 0.0
    %v270 = vmax.f32 %v246, 0.0
    %v271 = vmax.f32 %v251, 0.0
    %v272 = vmax.f32 %v254, 0.0
    %v273 = vld [vmem:[%s0] sm:$0xff]
    %v274 = vld [vmem:[%s0 + $0x8] sm:$0xff]
    %v275 = vld [vmem:[%s0 + $0x10] sm:$0xff]
    %v276 = vld [vmem:[%s0 + $0x18] sm:$0xff]
    %v277 = vld [vmem:[%s0 + $0x20] sm:$0xff]
    %v278 = vld [vmem:[%s0 + $0x28] sm:$0xff]
    %v279 = vld [vmem:[%s0 + $0x30] sm:$0xff]
    %v280 = vld [vmem:[%s0 + $0x38] sm:$0xff]
    %v281 = vld [vmem:[%s0 + $0x40] sm:$0xff]
    %v282 = vld [vmem:[%s0 + $0x48] sm:$0xff]
    %v283 = vld [vmem:[%s0 + $0x50] sm:$0xff]
    %v284 = vld [vmem:[%s0 + $0x58] sm:$0xff]
    %v285 = vld [vmem:[%s0 + $0x60] sm:$0xff]
    %v286 = vld [vmem:[%s0 + $0x68] sm:$0xff]
    %v287 = vld [vmem:[%s0 + $0x70] sm:$0xff]
    %v288 = vld [vmem:[%s0 + $0x78] sm:$0xff]
    %290 = vset.pattern.permute.xlu0 0
    %291 = vperm.xlu0 %290, %v273
    %v292 = vpop.permute.xlu0 %291
    %295 = vset.pattern.permute.xlu0 0
    %296 = vperm.xlu0 %295, %v274
    %v297 = vpop.permute.xlu0 %296
    %300 = vset.pattern.permute.xlu0 0
    %301 = vperm.xlu0 %300, %v275
    %v302 = vpop.permute.xlu0 %301
    %305 = vset.pattern.permute.xlu0 0
    %306 = vperm.xlu0 %305, %v276
    %v307 = vpop.permute.xlu0 %306
    %310 = vset.pattern.permute.xlu0 0
    %311 = vperm.xlu0 %310, %v277
    %v312 = vpop.permute.xlu0 %311
    %315 = vset.pattern.permute.xlu0 0
    %316 = vperm.xlu0 %315, %v278
    %v317 = vpop.permute.xlu0 %316
    %320 = vset.pattern.permute.xlu0 0
    %321 = vperm.xlu0 %320, %v279
    %v322 = vpop.permute.xlu0 %321
    %325 = vset.pattern.permute.xlu0 0
    %326 = vperm.xlu0 %325, %v280
    %v327 = vpop.permute.xlu0 %326
    %330 = vset.pattern.permute.xlu0 0
    %331 = vperm.xlu0 %330, %v281
    %v332 = vpop.permute.xlu0 %331
    %335 = vset.pattern.permute.xlu0 0
    %336 = vperm.xlu0 %335, %v282
    %v337 = vpop.permute.xlu0 %336
    %340 = vset.pattern.permute.xlu0 0
    %341 = vperm.xlu0 %340, %v283
    %v342 = vpop.permute.xlu0 %341
    %345 = vset.pattern.permute.xlu0 0
    %346 = vperm.xlu0 %345, %v284
    %v347 = vpop.permute.xlu0 %346
    %350 = vset.pattern.permute.xlu0 0
    %351 = vperm.xlu0 %350, %v285
    %v352 = vpop.permute.xlu0 %351
    %355 = vset.pattern.permute.xlu0 0
    %356 = vperm.xlu0 %355, %v286
    %v357 = vpop.permute.xlu0 %356
    %360 = vset.pattern.permute.xlu0 0
    %361 = vperm.xlu0 %360, %v287
    %v362 = vpop.permute.xlu0 %361
    %365 = vset.pattern.permute.xlu0 0
    %366 = vperm.xlu0 %365, %v288
    %v367 = vpop.permute.xlu0 %366
    %v369 = vmul.f32 %v292, %v257
    %v370 = vmul.f32 %v297, %v258
    %v371 = vmul.f32 %v302, %v259
    %v372 = vmul.f32 %v307, %v260
    %v373 = vmul.f32 %v312, %v261
    %v374 = vmul.f32 %v317, %v262
    %v375 = vmul.f32 %v322, %v263
    %v376 = vmul.f32 %v327, %v264
    %v377 = vmul.f32 %v332, %v265
    %v378 = vmul.f32 %v337, %v266
    %v379 = vmul.f32 %v342, %v267
    %v380 = vmul.f32 %v347, %v268
    %v381 = vmul.f32 %v352, %v269
    %v382 = vmul.f32 %v357, %v270
    %v383 = vmul.f32 %v362, %v271
    %v384 = vmul.f32 %v367, %v272
    %v385 = vmax.f32 %v369, %v373
    %v386 = vmax.f32 %v370, %v374
    %v387 = vmax.f32 %v371, %v375
    %v388 = vmax.f32 %v372, %v376
    %v389 = vmax.f32 %v385, %v377
    %v390 = vmax.f32 %v386, %v378
    %v391 = vmax.f32 %v387, %v379
    %v392 = vmax.f32 %v388, %v380
    %v393 = vmax.f32 %v389, %v381
    %v394 = vmax.f32 %v390, %v382
    %v395 = vmax.f32 %v391, %v383
    %v396 = vmax.f32 %v392, %v384
    %v397 = vmax.f32 %v393, %v394
    %v398 = vmax.f32 %v395, %v396
    %v399 = vmax.f32 %v397, %v398
    %v400 = vrot.slane %v399, 4
    %v401 = vmax.f32 %v399, %v400
    %v402 = vrot.slane %v401, 2
    %v403 = vmax.f32 %v401, %v402
    %v404 = vrot.slane %v403, 1
    %v405 = vmax.f32 %v403, %v404
    %406 = vset.pattern.permute.xlu0 1
    %407 = vperm.xlu0 %406, %v273
    %v408 = vpop.permute.xlu0 %407
    %410 = vset.pattern.permute.xlu0 1
    %411 = vperm.xlu0 %410, %v274
    %v412 = vpop.permute.xlu0 %411
    %414 = vset.pattern.permute.xlu0 1
    %415 = vperm.xlu0 %414, %v275
    %v416 = vpop.permute.xlu0 %415
    %418 = vset.pattern.permute.xlu0 1
    %419 = vperm.xlu0 %418, %v276
    %v420 = vpop.permute.xlu0 %419
    %422 = vset.pattern.permute.xlu0 1
    %423 = vperm.xlu0 %422, %v277
    %v424 = vpop.permute.xlu0 %423
    %426 = vset.pattern.permute.xlu0 1
    %427 = vperm.xlu0 %426, %v278
    %v428 = vpop.permute.xlu0 %427
    %430 = vset.pattern.permute.xlu0 1
    %431 = vperm.xlu0 %430, %v279
    %v432 = vpop.permute.xlu0 %431
    %434 = vset.pattern.permute.xlu0 1
    %435 = vperm.xlu0 %434, %v280
    %v436 = vpop.permute.xlu0 %435
    %438 = vset.pattern.permute.xlu0 1
    %439 = vperm.xlu0 %438, %v281
    %v440 = vpop.permute.xlu0 %439
    %442 = vset.pattern.permute.xlu0 1
    %443 = vperm.xlu0 %442, %v282
    %v444 = vpop.permute.xlu0 %443
    %446 = vset.pattern.permute.xlu0 1
    %447 = vperm.xlu0 %446, %v283
    %v448 = vpop.permute.xlu0 %447
    %450 = vset.pattern.permute.xlu0 1
    %451 = vperm.xlu0 %450, %v284
    %v452 = vpop.permute.xlu0 %451
    %454 = vset.pattern.permute.xlu0 1
    %455 = vperm.xlu0 %454, %v285
    %v456 = vpop.permute.xlu0 %455
    %458 = vset.pattern.permute.xlu0 1
    %459 = vperm.xlu0 %458, %v286
    %v460 = vpop.permute.xlu0 %459
    %462 = vset.pattern.permute.xlu0 1
    %463 = vperm.xlu0 %462, %v287
    %v464 = vpop.permute.xlu0 %463
    %466 = vset.pattern.permute.xlu0 1
    %467 = vperm.xlu0 %466, %v288
    %v468 = vpop.permute.xlu0 %467
    %v470 = vmul.f32 %v408, %v257
    %v471 = vmul.f32 %v412, %v258
    %v472 = vmul.f32 %v416, %v259
    %v473 = vmul.f32 %v420, %v260
    %v474 = vmul.f32 %v424, %v261
    %v475 = vmul.f32 %v428, %v262
    %v476 = vmul.f32 %v432, %v263
    %v477 = vmul.f32 %v436, %v264
    %v478 = vmul.f32 %v440, %v265
    %v479 = vmul.f32 %v444, %v266
    %v480 = vmul.f32 %v448, %v267
    %v481 = vmul.f32 %v452, %v268
    %v482 = vmul.f32 %v456, %v269
    %v483 = vmul.f32 %v460, %v270
    %v484 = vmul.f32 %v464, %v271
    %v485 = vmul.f32 %v468, %v272
    %v486 = vmax.f32 %v470, %v474
    %v487 = vmax.f32 %v471, %v475
    %v488 = vmax.f32 %v472, %v476
    %v489 = vmax.f32 %v473, %v477
    %v490 = vmax.f32 %v486, %v478
    %v491 = vmax.f32 %v487, %v479
    %v492 = vmax.f32 %v488, %v480
    %v493 = vmax.f32 %v489, %v481
    %v494 = vmax.f32 %v490, %v482
    %v495 = vmax.f32 %v491, %v483
    %v496 = vmax.f32 %v492, %v484
    %v497 = vmax.f32 %v493, %v485
    %v498 = vmax.f32 %v494, %v495
    %v499 = vmax.f32 %v496, %v497
    %v500 = vmax.f32 %v498, %v499
    %v501 = vrot.slane %v500, 4
    %v502 = vmax.f32 %v500, %v501
    %v503 = vrot.slane %v502, 2
    %v504 = vmax.f32 %v502, %v503
    %v505 = vrot.slane %v504, 1
    %v506 = vmax.f32 %v504, %v505
    %507 = vset.pattern.permute.xlu0 2
    %508 = vperm.xlu0 %507, %v273
    %v509 = vpop.permute.xlu0 %508
    %511 = vset.pattern.permute.xlu0 2
    %512 = vperm.xlu0 %511, %v274
    %v513 = vpop.permute.xlu0 %512
    %515 = vset.pattern.permute.xlu0 2
    %516 = vperm.xlu0 %515, %v275
    %v517 = vpop.permute.xlu0 %516
    %519 = vset.pattern.permute.xlu0 2
    %520 = vperm.xlu0 %519, %v276
    %v521 = vpop.permute.xlu0 %520
    %523 = vset.pattern.permute.xlu0 2
    %524 = vperm.xlu0 %523, %v277
    %v525 = vpop.permute.xlu0 %524
    %527 = vset.pattern.permute.xlu0 2
    %528 = vperm.xlu0 %527, %v278
    %v529 = vpop.permute.xlu0 %528
    %531 = vset.pattern.permute.xlu0 2
    %532 = vperm.xlu0 %531, %v279
    %v533 = vpop.permute.xlu0 %532
    %535 = vset.pattern.permute.xlu0 2
    %536 = vperm.xlu0 %535, %v280
    %v537 = vpop.permute.xlu0 %536
    %539 = vset.pattern.permute.xlu0 2
    %540 = vperm.xlu0 %539, %v281
    %v541 = vpop.permute.xlu0 %540
    %543 = vset.pattern.permute.xlu0 2
    %544 = vperm.xlu0 %543, %v282
    %v545 = vpop.permute.xlu0 %544
    %547 = vset.pattern.permute.xlu0 2
    %548 = vperm.xlu0 %547, %v283
    %v549 = vpop.permute.xlu0 %548
    %551 = vset.pattern.permute.xlu0 2
    %552 = vperm.xlu0 %551, %v284
    %v553 = vpop.permute.xlu0 %552
    %555 = vset.pattern.permute.xlu0 2
    %556 = vperm.xlu0 %555, %v285
    %v557 = vpop.permute.xlu0 %556
    %559 = vset.pattern.permute.xlu0 2
    %560 = vperm.xlu0 %559, %v286
    %v561 = vpop.permute.xlu0 %560
    %563 = vset.pattern.permute.xlu0 2
    %564 = vperm.xlu0 %563, %v287
    %v565 = vpop.permute.xlu0 %564
    %567 = vset.pattern.permute.xlu0 2
    %568 = vperm.xlu0 %567, %v288
    %v569 = vpop.permute.xlu0 %568
    %v571 = vmul.f32 %v509, %v257
    %v572 = vmul.f32 %v513, %v258
    %v573 = vmul.f32 %v517, %v259
    %v574 = vmul.f32 %v521, %v260
    %v575 = vmul.f32 %v525, %v261
    %v576 = vmul.f32 %v529, %v262
    %v577 = vmul.f32 %v533, %v263
    %v578 = vmul.f32 %v537, %v264
    %v579 = vmul.f32 %v541, %v265
    %v580 = vmul.f32 %v545, %v266
    %v581 = vmul.f32 %v549, %v267
    %v582 = vmul.f32 %v553, %v268
    %v583 = vmul.f32 %v557, %v269
    %v584 = vmul.f32 %v561, %v270
    %v585 = vmul.f32 %v565, %v271
    %v586 = vmul.f32 %v569, %v272
    %v587 = vmax.f32 %v571, %v575
    %v588 = vmax.f32 %v572, %v576
    %v589 = vmax.f32 %v573, %v577
    %v590 = vmax.f32 %v574, %v578
    %v591 = vmax.f32 %v587, %v579
    %v592 = vmax.f32 %v588, %v580
    %v593 = vmax.f32 %v589, %v581
    %v594 = vmax.f32 %v590, %v582
    %v595 = vmax.f32 %v591, %v583
    %v596 = vmax.f32 %v592, %v584
    %v597 = vmax.f32 %v593, %v585
    %v598 = vmax.f32 %v594, %v586
    %v599 = vmax.f32 %v595, %v596
    %v600 = vmax.f32 %v597, %v598
    %v601 = vmax.f32 %v599, %v600
    %v602 = vrot.slane %v601, 4
    %v603 = vmax.f32 %v601, %v602
    %v604 = vrot.slane %v603, 2
    %v605 = vmax.f32 %v603, %v604
    %v606 = vrot.slane %v605, 1
    %v607 = vmax.f32 %v605, %v606
    %608 = vset.pattern.permute.xlu0 3
    %609 = vperm.xlu0 %608, %v273
    %v610 = vpop.permute.xlu0 %609
    %612 = vset.pattern.permute.xlu0 3
    %613 = vperm.xlu0 %612, %v274
    %v614 = vpop.permute.xlu0 %613
    %616 = vset.pattern.permute.xlu0 3
    %617 = vperm.xlu0 %616, %v275
    %v618 = vpop.permute.xlu0 %617
    %620 = vset.pattern.permute.xlu0 3
    %621 = vperm.xlu0 %620, %v276
    %v622 = vpop.permute.xlu0 %621
    %624 = vset.pattern.permute.xlu0 3
    %625 = vperm.xlu0 %624, %v277
    %v626 = vpop.permute.xlu0 %625
    %628 = vset.pattern.permute.xlu0 3
    %629 = vperm.xlu0 %628, %v278
    %v630 = vpop.permute.xlu0 %629
    %632 = vset.pattern.permute.xlu0 3
    %633 = vperm.xlu0 %632, %v279
    %v634 = vpop.permute.xlu0 %633
    %636 = vset.pattern.permute.xlu0 3
    %637 = vperm.xlu0 %636, %v280
    %v638 = vpop.permute.xlu0 %637
    %640 = vset.pattern.permute.xlu0 3
    %641 = vperm.xlu0 %640, %v281
    %v642 = vpop.permute.xlu0 %641
    %644 = vset.pattern.permute.xlu0 3
    %645 = vperm.xlu0 %644, %v282
    %v646 = vpop.permute.xlu0 %645
    %648 = vset.pattern.permute.xlu0 3
    %649 = vperm.xlu0 %648, %v283
    %v650 = vpop.permute.xlu0 %649
    %652 = vset.pattern.permute.xlu0 3
    %653 = vperm.xlu0 %652, %v284
    %v654 = vpop.permute.xlu0 %653
    %656 = vset.pattern.permute.xlu0 3
    %657 = vperm.xlu0 %656, %v285
    %v658 = vpop.permute.xlu0 %657
    %660 = vset.pattern.permute.xlu0 3
    %661 = vperm.xlu0 %660, %v286
    %v662 = vpop.permute.xlu0 %661
    %664 = vset.pattern.permute.xlu0 3
    %665 = vperm.xlu0 %664, %v287
    %v666 = vpop.permute.xlu0 %665
    %668 = vset.pattern.permute.xlu0 3
    %669 = vperm.xlu0 %668, %v288
    %v670 = vpop.permute.xlu0 %669
    %v672 = vmul.f32 %v610, %v257
    %v673 = vmul.f32 %v614, %v258
    %v674 = vmul.f32 %v618, %v259
    %v675 = vmul.f32 %v622, %v260
    %v676 = vmul.f32 %v626, %v261
    %v677 = vmul.f32 %v630, %v262
    %v678 = vmul.f32 %v634, %v263
    %v679 = vmul.f32 %v638, %v264
    %v680 = vmul.f32 %v642, %v265
    %v681 = vmul.f32 %v646, %v266
    %v682 = vmul.f32 %v650, %v267
    %v683 = vmul.f32 %v654, %v268
    %v684 = vmul.f32 %v658, %v269
    %v685 = vmul.f32 %v662, %v270
    %v686 = vmul.f32 %v666, %v271
    %v687 = vmul.f32 %v670, %v272
    %v688 = vmax.f32 %v672, %v676
    %v689 = vmax.f32 %v673, %v677
    %v690 = vmax.f32 %v674, %v678
    %v691 = vmax.f32 %v675, %v679
    %v692 = vmax.f32 %v688, %v680
    %v693 = vmax.f32 %v689, %v681
    %v694 = vmax.f32 %v690, %v682
    %v695 = vmax.f32 %v691, %v683
    %v696 = vmax.f32 %v692, %v684
    %v697 = vmax.f32 %v693, %v685
    %v698 = vmax.f32 %v694, %v686
    %v699 = vmax.f32 %v695, %v687
    %v700 = vmax.f32 %v696, %v697
    %v701 = vmax.f32 %v698, %v699
    %v702 = vmax.f32 %v700, %v701
    %v703 = vrot.slane %v702, 4
    %v704 = vmax.f32 %v702, %v703
    %v705 = vrot.slane %v704, 2
    %v706 = vmax.f32 %v704, %v705
    %v707 = vrot.slane %v706, 1
    %v708 = vmax.f32 %v706, %v707
    %709 = vset.pattern.permute.xlu0 4
    %710 = vperm.xlu0 %709, %v273
    %v711 = vpop.permute.xlu0 %710
    %713 = vset.pattern.permute.xlu0 4
    %714 = vperm.xlu0 %713, %v274
    %v715 = vpop.permute.xlu0 %714
    %717 = vset.pattern.permute.xlu0 4
    %718 = vperm.xlu0 %717, %v275
    %v719 = vpop.permute.xlu0 %718
    %721 = vset.pattern.permute.xlu0 4
    %722 = vperm.xlu0 %721, %v276
    %v723 = vpop.permute.xlu0 %722
    %725 = vset.pattern.permute.xlu0 4
    %726 = vperm.xlu0 %725, %v277
    %v727 = vpop.permute.xlu0 %726
    %729 = vset.pattern.permute.xlu0 4
    %730 = vperm.xlu0 %729, %v278
    %v731 = vpop.permute.xlu0 %730
    %733 = vset.pattern.permute.xlu0 4
    %734 = vperm.xlu0 %733, %v279
    %v735 = vpop.permute.xlu0 %734
    %737 = vset.pattern.permute.xlu0 4
    %738 = vperm.xlu0 %737, %v280
    %v739 = vpop.permute.xlu0 %738
    %741 = vset.pattern.permute.xlu0 4
    %742 = vperm.xlu0 %741, %v281
    %v743 = vpop.permute.xlu0 %742
    %745 = vset.pattern.permute.xlu0 4
    %746 = vperm.xlu0 %745, %v282
    %v747 = vpop.permute.xlu0 %746
    %749 = vset.pattern.permute.xlu0 4
    %750 = vperm.xlu0 %749, %v283
    %v751 = vpop.permute.xlu0 %750
    %753 = vset.pattern.permute.xlu0 4
    %754 = vperm.xlu0 %753, %v284
    %v755 = vpop.permute.xlu0 %754
    %757 = vset.pattern.permute.xlu0 4
    %758 = vperm.xlu0 %757, %v285
    %v759 = vpop.permute.xlu0 %758
    %761 = vset.pattern.permute.xlu0 4
    %762 = vperm.xlu0 %761, %v286
    %v763 = vpop.permute.xlu0 %762
    %765 = vset.pattern.permute.xlu0 4
    %766 = vperm.xlu0 %765, %v287
    %v767 = vpop.permute.xlu0 %766
    %769 = vset.pattern.permute.xlu0 4
    %770 = vperm.xlu0 %769, %v288
    %v771 = vpop.permute.xlu0 %770
    %v773 = vmul.f32 %v711, %v257
    %v774 = vmul.f32 %v715, %v258
    %v775 = vmul.f32 %v719, %v259
    %v776 = vmul.f32 %v723, %v260
    %v777 = vmul.f32 %v727, %v261
    %v778 = vmul.f32 %v731, %v262
    %v779 = vmul.f32 %v735, %v263
    %v780 = vmul.f32 %v739, %v264
    %v781 = vmul.f32 %v743, %v265
    %v782 = vmul.f32 %v747, %v266
    %v783 = vmul.f32 %v751, %v267
    %v784 = vmul.f32 %v755, %v268
    %v785 = vmul.f32 %v759, %v269
    %v786 = vmul.f32 %v763, %v270
    %v787 = vmul.f32 %v767, %v271
    %v788 = vmul.f32 %v771, %v272
    %v789 = vmax.f32 %v773, %v777
    %v790 = vmax.f32 %v774, %v778
    %v791 = vmax.f32 %v775, %v779
    %v792 = vmax.f32 %v776, %v780
    %v793 = vmax.f32 %v789, %v781
    %v794 = vmax.f32 %v790, %v782
    %v795 = vmax.f32 %v791, %v783
    %v796 = vmax.f32 %v792, %v784
    %v797 = vmax.f32 %v793, %v785
    %v798 = vmax.f32 %v794, %v786
    %v799 = vmax.f32 %v795, %v787
    %v800 = vmax.f32 %v796, %v788
    %v801 = vmax.f32 %v797, %v798
    %v802 = vmax.f32 %v799, %v800
    %v803 = vmax.f32 %v801, %v802
    %v804 = vrot.slane %v803, 4
    %v805 = vmax.f32 %v803, %v804
    %v806 = vrot.slane %v805, 2
    %v807 = vmax.f32 %v805, %v806
    %v808 = vrot.slane %v807, 1
    %v809 = vmax.f32 %v807, %v808
    %810 = vset.pattern.permute.xlu0 5
    %811 = vperm.xlu0 %810, %v273
    %v812 = vpop.permute.xlu0 %811
    %814 = vset.pattern.permute.xlu0 5
    %815 = vperm.xlu0 %814, %v274
    %v816 = vpop.permute.xlu0 %815
    %818 = vset.pattern.permute.xlu0 5
    %819 = vperm.xlu0 %818, %v275
    %v820 = vpop.permute.xlu0 %819
    %822 = vset.pattern.permute.xlu0 5
    %823 = vperm.xlu0 %822, %v276
    %v824 = vpop.permute.xlu0 %823
    %826 = vset.pattern.permute.xlu0 5
    %827 = vperm.xlu0 %826, %v277
    %v828 = vpop.permute.xlu0 %827
    %830 = vset.pattern.permute.xlu0 5
    %831 = vperm.xlu0 %830, %v278
    %v832 = vpop.permute.xlu0 %831
    %834 = vset.pattern.permute.xlu0 5
    %835 = vperm.xlu0 %834, %v279
    %v836 = vpop.permute.xlu0 %835
    %838 = vset.pattern.permute.xlu0 5
    %839 = vperm.xlu0 %838, %v280
    %v840 = vpop.permute.xlu0 %839
    %842 = vset.pattern.permute.xlu0 5
    %843 = vperm.xlu0 %842, %v281
    %v844 = vpop.permute.xlu0 %843
    %846 = vset.pattern.permute.xlu0 5
    %847 = vperm.xlu0 %846, %v282
    %v848 = vpop.permute.xlu0 %847
    %850 = vset.pattern.permute.xlu0 5
    %851 = vperm.xlu0 %850, %v283
    %v852 = vpop.permute.xlu0 %851
    %854 = vset.pattern.permute.xlu0 5
    %855 = vperm.xlu0 %854, %v284
    %v856 = vpop.permute.xlu0 %855
    %858 = vset.pattern.permute.xlu0 5
    %859 = vperm.xlu0 %858, %v285
    %v860 = vpop.permute.xlu0 %859
    %862 = vset.pattern.permute.xlu0 5
    %863 = vperm.xlu0 %862, %v286
    %v864 = vpop.permute.xlu0 %863
    %866 = vset.pattern.permute.xlu0 5
    %867 = vperm.xlu0 %866, %v287
    %v868 = vpop.permute.xlu0 %867
    %870 = vset.pattern.permute.xlu0 5
    %871 = vperm.xlu0 %870, %v288
    %v872 = vpop.permute.xlu0 %871
    %v874 = vmul.f32 %v812, %v257
    %v875 = vmul.f32 %v816, %v258
    %v876 = vmul.f32 %v820, %v259
    %v877 = vmul.f32 %v824, %v260
    %v878 = vmul.f32 %v828, %v261
    %v879 = vmul.f32 %v832, %v262
    %v880 = vmul.f32 %v836, %v263
    %v881 = vmul.f32 %v840, %v264
    %v882 = vmul.f32 %v844, %v265
    %v883 = vmul.f32 %v848, %v266
    %v884 = vmul.f32 %v852, %v267
    %v885 = vmul.f32 %v856, %v268
    %v886 = vmul.f32 %v860, %v269
    %v887 = vmul.f32 %v864, %v270
    %v888 = vmul.f32 %v868, %v271
    %v889 = vmul.f32 %v872, %v272
    %v890 = vmax.f32 %v874, %v878
    %v891 = vmax.f32 %v875, %v879
    %v892 = vmax.f32 %v876, %v880
    %v893 = vmax.f32 %v877, %v881
    %v894 = vmax.f32 %v890, %v882
    %v895 = vmax.f32 %v891, %v883
    %v896 = vmax.f32 %v892, %v884
    %v897 = vmax.f32 %v893, %v885
    %v898 = vmax.f32 %v894, %v886
    %v899 = vmax.f32 %v895, %v887
    %v900 = vmax.f32 %v896, %v888
    %v901 = vmax.f32 %v897, %v889
    %v902 = vmax.f32 %v898, %v899
    %v903 = vmax.f32 %v900, %v901
    %v904 = vmax.f32 %v902, %v903
    %v905 = vrot.slane %v904, 4
    %v906 = vmax.f32 %v904, %v905
    %v907 = vrot.slane %v906, 2
    %v908 = vmax.f32 %v906, %v907
    %v909 = vrot.slane %v908, 1
    %v910 = vmax.f32 %v908, %v909
    %911 = vset.pattern.permute.xlu0 6
    %912 = vperm.xlu0 %911, %v273
    %v913 = vpop.permute.xlu0 %912
    %915 = vset.pattern.permute.xlu0 6
    %916 = vperm.xlu0 %915, %v274
    %v917 = vpop.permute.xlu0 %916
    %919 = vset.pattern.permute.xlu0 6
    %920 = vperm.xlu0 %919, %v275
    %v921 = vpop.permute.xlu0 %920
    %923 = vset.pattern.permute.xlu0 6
    %924 = vperm.xlu0 %923, %v276
    %v925 = vpop.permute.xlu0 %924
    %927 = vset.pattern.permute.xlu0 6
    %928 = vperm.xlu0 %927, %v277
    %v929 = vpop.permute.xlu0 %928
    %931 = vset.pattern.permute.xlu0 6
    %932 = vperm.xlu0 %931, %v278
    %v933 = vpop.permute.xlu0 %932
    %935 = vset.pattern.permute.xlu0 6
    %936 = vperm.xlu0 %935, %v279
    %v937 = vpop.permute.xlu0 %936
    %939 = vset.pattern.permute.xlu0 6
    %940 = vperm.xlu0 %939, %v280
    %v941 = vpop.permute.xlu0 %940
    %943 = vset.pattern.permute.xlu0 6
    %944 = vperm.xlu0 %943, %v281
    %v945 = vpop.permute.xlu0 %944
    %947 = vset.pattern.permute.xlu0 6
    %948 = vperm.xlu0 %947, %v282
    %v949 = vpop.permute.xlu0 %948
    %951 = vset.pattern.permute.xlu0 6
    %952 = vperm.xlu0 %951, %v283
    %v953 = vpop.permute.xlu0 %952
    %955 = vset.pattern.permute.xlu0 6
    %956 = vperm.xlu0 %955, %v284
    %v957 = vpop.permute.xlu0 %956
    %959 = vset.pattern.permute.xlu0 6
    %960 = vperm.xlu0 %959, %v285
    %v961 = vpop.permute.xlu0 %960
    %963 = vset.pattern.permute.xlu0 6
    %964 = vperm.xlu0 %963, %v286
    %v965 = vpop.permute.xlu0 %964
    %967 = vset.pattern.permute.xlu0 6
    %968 = vperm.xlu0 %967, %v287
    %v969 = vpop.permute.xlu0 %968
    %971 = vset.pattern.permute.xlu0 6
    %972 = vperm.xlu0 %971, %v288
    %v973 = vpop.permute.xlu0 %972
    %v975 = vmul.f32 %v913, %v257
    %v976 = vmul.f32 %v917, %v258
    %v977 = vmul.f32 %v921, %v259
    %v978 = vmul.f32 %v925, %v260
    %v979 = vmul.f32 %v929, %v261
    %v980 = vmul.f32 %v933, %v262
    %v981 = vmul.f32 %v937, %v263
    %v982 = vmul.f32 %v941, %v264
    %v983 = vmul.f32 %v945, %v265
    %v984 = vmul.f32 %v949, %v266
    %v985 = vmul.f32 %v953, %v267
    %v986 = vmul.f32 %v957, %v268
    %v987 = vmul.f32 %v961, %v269
    %v988 = vmul.f32 %v965, %v270
    %v989 = vmul.f32 %v969, %v271
    %v990 = vmul.f32 %v973, %v272
    %v991 = vmax.f32 %v975, %v979
    %v992 = vmax.f32 %v976, %v980
    %v993 = vmax.f32 %v977, %v981
    %v994 = vmax.f32 %v978, %v982
    %v995 = vmax.f32 %v991, %v983
    %v996 = vmax.f32 %v992, %v984
    %v997 = vmax.f32 %v993, %v985
    %v998 = vmax.f32 %v994, %v986
    %v999 = vmax.f32 %v995, %v987
    %v1000 = vmax.f32 %v996, %v988
    %v1001 = vmax.f32 %v997, %v989
    %v1002 = vmax.f32 %v998, %v990
    %v1003 = vmax.f32 %v999, %v1000
    %v1004 = vmax.f32 %v1001, %v1002
    %v1005 = vmax.f32 %v1003, %v1004
    %v1006 = vrot.slane %v1005, 4
    %v1007 = vmax.f32 %v1005, %v1006
    %v1008 = vrot.slane %v1007, 2
    %v1009 = vmax.f32 %v1007, %v1008
    %v1010 = vrot.slane %v1009, 1
    %v1011 = vmax.f32 %v1009, %v1010
    %1012 = vset.pattern.permute.xlu0 7
    %1013 = vperm.xlu0 %1012, %v273
    %v1014 = vpop.permute.xlu0 %1013
    %1016 = vset.pattern.permute.xlu0 7
    %1017 = vperm.xlu0 %1016, %v274
    %v1018 = vpop.permute.xlu0 %1017
    %1020 = vset.pattern.permute.xlu0 7
    %1021 = vperm.xlu0 %1020, %v275
    %v1022 = vpop.permute.xlu0 %1021
    %1024 = vset.pattern.permute.xlu0 7
    %1025 = vperm.xlu0 %1024, %v276
    %v1026 = vpop.permute.xlu0 %1025
    %1028 = vset.pattern.permute.xlu0 7
    %1029 = vperm.xlu0 %1028, %v277
    %v1030 = vpop.permute.xlu0 %1029
    %1032 = vset.pattern.permute.xlu0 7
    %1033 = vperm.xlu0 %1032, %v278
    %v1034 = vpop.permute.xlu0 %1033
    %1036 = vset.pattern.permute.xlu0 7
    %1037 = vperm.xlu0 %1036, %v279
    %v1038 = vpop.permute.xlu0 %1037
    %1040 = vset.pattern.permute.xlu0 7
    %1041 = vperm.xlu0 %1040, %v280
    %v1042 = vpop.permute.xlu0 %1041
    %1044 = vset.pattern.permute.xlu0 7
    %1045 = vperm.xlu0 %1044, %v281
    %v1046 = vpop.permute.xlu0 %1045
    %1048 = vset.pattern.permute.xlu0 7
    %1049 = vperm.xlu0 %1048, %v282
    %v1050 = vpop.permute.xlu0 %1049
    %1052 = vset.pattern.permute.xlu0 7
    %1053 = vperm.xlu0 %1052, %v283
    %v1054 = vpop.permute.xlu0 %1053
    %1056 = vset.pattern.permute.xlu0 7
    %1057 = vperm.xlu0 %1056, %v284
    %v1058 = vpop.permute.xlu0 %1057
    %1060 = vset.pattern.permute.xlu0 7
    %1061 = vperm.xlu0 %1060, %v285
    %v1062 = vpop.permute.xlu0 %1061
    %1064 = vset.pattern.permute.xlu0 7
    %1065 = vperm.xlu0 %1064, %v286
    %v1066 = vpop.permute.xlu0 %1065
    %1068 = vset.pattern.permute.xlu0 7
    %1069 = vperm.xlu0 %1068, %v287
    %v1070 = vpop.permute.xlu0 %1069
    %1072 = vset.pattern.permute.xlu0 7
    %1073 = vperm.xlu0 %1072, %v288
    %v1074 = vpop.permute.xlu0 %1073
    %v1076 = vmul.f32 %v1014, %v257
    %v1077 = vmul.f32 %v1018, %v258
    %v1078 = vmul.f32 %v1022, %v259
    %v1079 = vmul.f32 %v1026, %v260
    %v1080 = vmul.f32 %v1030, %v261
    %v1081 = vmul.f32 %v1034, %v262
    %v1082 = vmul.f32 %v1038, %v263
    %v1083 = vmul.f32 %v1042, %v264
    %v1084 = vmul.f32 %v1046, %v265
    %v1085 = vmul.f32 %v1050, %v266
    %v1086 = vmul.f32 %v1054, %v267
    %v1087 = vmul.f32 %v1058, %v268
    %v1088 = vmul.f32 %v1062, %v269
    %v1089 = vmul.f32 %v1066, %v270
    %v1090 = vmul.f32 %v1070, %v271
    %v1091 = vmul.f32 %v1074, %v272
    %v1092 = vmax.f32 %v1076, %v1080
    %v1093 = vmax.f32 %v1077, %v1081
    %v1094 = vmax.f32 %v1078, %v1082
    %v1095 = vmax.f32 %v1079, %v1083
    %v1096 = vmax.f32 %v1092, %v1084
    %v1097 = vmax.f32 %v1093, %v1085
    %v1098 = vmax.f32 %v1094, %v1086
    %v1099 = vmax.f32 %v1095, %v1087
    %v1100 = vmax.f32 %v1096, %v1088
    %v1101 = vmax.f32 %v1097, %v1089
    %v1102 = vmax.f32 %v1098, %v1090
    %v1103 = vmax.f32 %v1099, %v1091
    %v1104 = vmax.f32 %v1100, %v1101
    %v1105 = vmax.f32 %v1102, %v1103
    %v1106 = vmax.f32 %v1104, %v1105
    %v1107 = vrot.slane %v1106, 4
    %v1108 = vmax.f32 %v1106, %v1107
    %v1109 = vrot.slane %v1108, 2
    %v1110 = vmax.f32 %v1108, %v1109
    %v1111 = vrot.slane %v1110, 1
    %v1112 = vmax.f32 %v1110, %v1111
    %1113 = vset.pattern.permute.xlu0 8
    %1114 = vperm.xlu0 %1113, %v273
    %v1115 = vpop.permute.xlu0 %1114
    %1117 = vset.pattern.permute.xlu0 8
    %1118 = vperm.xlu0 %1117, %v274
    %v1119 = vpop.permute.xlu0 %1118
    %1121 = vset.pattern.permute.xlu0 8
    %1122 = vperm.xlu0 %1121, %v275
    %v1123 = vpop.permute.xlu0 %1122
    %1125 = vset.pattern.permute.xlu0 8
    %1126 = vperm.xlu0 %1125, %v276
    %v1127 = vpop.permute.xlu0 %1126
    %1129 = vset.pattern.permute.xlu0 8
    %1130 = vperm.xlu0 %1129, %v277
    %v1131 = vpop.permute.xlu0 %1130
    %1133 = vset.pattern.permute.xlu0 8
    %1134 = vperm.xlu0 %1133, %v278
    %v1135 = vpop.permute.xlu0 %1134
    %1137 = vset.pattern.permute.xlu0 8
    %1138 = vperm.xlu0 %1137, %v279
    %v1139 = vpop.permute.xlu0 %1138
    %1141 = vset.pattern.permute.xlu0 8
    %1142 = vperm.xlu0 %1141, %v280
    %v1143 = vpop.permute.xlu0 %1142
    %1145 = vset.pattern.permute.xlu0 8
    %1146 = vperm.xlu0 %1145, %v281
    %v1147 = vpop.permute.xlu0 %1146
    %1149 = vset.pattern.permute.xlu0 8
    %1150 = vperm.xlu0 %1149, %v282
    %v1151 = vpop.permute.xlu0 %1150
    %1153 = vset.pattern.permute.xlu0 8
    %1154 = vperm.xlu0 %1153, %v283
    %v1155 = vpop.permute.xlu0 %1154
    %1157 = vset.pattern.permute.xlu0 8
    %1158 = vperm.xlu0 %1157, %v284
    %v1159 = vpop.permute.xlu0 %1158
    %1161 = vset.pattern.permute.xlu0 8
    %1162 = vperm.xlu0 %1161, %v285
    %v1163 = vpop.permute.xlu0 %1162
    %1165 = vset.pattern.permute.xlu0 8
    %1166 = vperm.xlu0 %1165, %v286
    %v1167 = vpop.permute.xlu0 %1166
    %1169 = vset.pattern.permute.xlu0 8
    %1170 = vperm.xlu0 %1169, %v287
    %v1171 = vpop.permute.xlu0 %1170
    %1173 = vset.pattern.permute.xlu0 8
    %1174 = vperm.xlu0 %1173, %v288
    %v1175 = vpop.permute.xlu0 %1174
    %v1177 = vmul.f32 %v1115, %v257
    %v1178 = vmul.f32 %v1119, %v258
    %v1179 = vmul.f32 %v1123, %v259
    %v1180 = vmul.f32 %v1127, %v260
    %v1181 = vmul.f32 %v1131, %v261
    %v1182 = vmul.f32 %v1135, %v262
    %v1183 = vmul.f32 %v1139, %v263
    %v1184 = vmul.f32 %v1143, %v264
    %v1185 = vmul.f32 %v1147, %v265
    %v1186 = vmul.f32 %v1151, %v266
    %v1187 = vmul.f32 %v1155, %v267
    %v1188 = vmul.f32 %v1159, %v268
    %v1189 = vmul.f32 %v1163, %v269
    %v1190 = vmul.f32 %v1167, %v270
    %v1191 = vmul.f32 %v1171, %v271
    %v1192 = vmul.f32 %v1175, %v272
    %v1193 = vmax.f32 %v1177, %v1181
    %v1194 = vmax.f32 %v1178, %v1182
    %v1195 = vmax.f32 %v1179, %v1183
    %v1196 = vmax.f32 %v1180, %v1184
    %v1197 = vmax.f32 %v1193, %v1185
    %v1198 = vmax.f32 %v1194, %v1186
    %v1199 = vmax.f32 %v1195, %v1187
    %v1200 = vmax.f32 %v1196, %v1188
    %v1201 = vmax.f32 %v1197, %v1189
    %v1202 = vmax.f32 %v1198, %v1190
    %v1203 = vmax.f32 %v1199, %v1191
    %v1204 = vmax.f32 %v1200, %v1192
    %v1205 = vmax.f32 %v1201, %v1202
    %v1206 = vmax.f32 %v1203, %v1204
    %v1207 = vmax.f32 %v1205, %v1206
    %v1208 = vrot.slane %v1207, 4
    %v1209 = vmax.f32 %v1207, %v1208
    %v1210 = vrot.slane %v1209, 2
    %v1211 = vmax.f32 %v1209, %v1210
    %v1212 = vrot.slane %v1211, 1
    %v1213 = vmax.f32 %v1211, %v1212
    %1214 = vset.pattern.permute.xlu0 9
    %1215 = vperm.xlu0 %1214, %v273
    %v1216 = vpop.permute.xlu0 %1215
    %1218 = vset.pattern.permute.xlu0 9
    %1219 = vperm.xlu0 %1218, %v274
    %v1220 = vpop.permute.xlu0 %1219
    %1222 = vset.pattern.permute.xlu0 9
    %1223 = vperm.xlu0 %1222, %v275
    %v1224 = vpop.permute.xlu0 %1223
    %1226 = vset.pattern.permute.xlu0 9
    %1227 = vperm.xlu0 %1226, %v276
    %v1228 = vpop.permute.xlu0 %1227
    %1230 = vset.pattern.permute.xlu0 9
    %1231 = vperm.xlu0 %1230, %v277
    %v1232 = vpop.permute.xlu0 %1231
    %1234 = vset.pattern.permute.xlu0 9
    %1235 = vperm.xlu0 %1234, %v278
    %v1236 = vpop.permute.xlu0 %1235
    %1238 = vset.pattern.permute.xlu0 9
    %1239 = vperm.xlu0 %1238, %v279
    %v1240 = vpop.permute.xlu0 %1239
    %1242 = vset.pattern.permute.xlu0 9
    %1243 = vperm.xlu0 %1242, %v280
    %v1244 = vpop.permute.xlu0 %1243
    %1246 = vset.pattern.permute.xlu0 9
    %1247 = vperm.xlu0 %1246, %v281
    %v1248 = vpop.permute.xlu0 %1247
    %1250 = vset.pattern.permute.xlu0 9
    %1251 = vperm.xlu0 %1250, %v282
    %v1252 = vpop.permute.xlu0 %1251
    %1254 = vset.pattern.permute.xlu0 9
    %1255 = vperm.xlu0 %1254, %v283
    %v1256 = vpop.permute.xlu0 %1255
    %1258 = vset.pattern.permute.xlu0 9
    %1259 = vperm.xlu0 %1258, %v284
    %v1260 = vpop.permute.xlu0 %1259
    %1262 = vset.pattern.permute.xlu0 9
    %1263 = vperm.xlu0 %1262, %v285
    %v1264 = vpop.permute.xlu0 %1263
    %1266 = vset.pattern.permute.xlu0 9
    %1267 = vperm.xlu0 %1266, %v286
    %v1268 = vpop.permute.xlu0 %1267
    %1270 = vset.pattern.permute.xlu0 9
    %1271 = vperm.xlu0 %1270, %v287
    %v1272 = vpop.permute.xlu0 %1271
    %1274 = vset.pattern.permute.xlu0 9
    %1275 = vperm.xlu0 %1274, %v288
    %v1276 = vpop.permute.xlu0 %1275
    %v1278 = vmul.f32 %v1216, %v257
    %v1279 = vmul.f32 %v1220, %v258
    %v1280 = vmul.f32 %v1224, %v259
    %v1281 = vmul.f32 %v1228, %v260
    %v1282 = vmul.f32 %v1232, %v261
    %v1283 = vmul.f32 %v1236, %v262
    %v1284 = vmul.f32 %v1240, %v263
    %v1285 = vmul.f32 %v1244, %v264
    %v1286 = vmul.f32 %v1248, %v265
    %v1287 = vmul.f32 %v1252, %v266
    %v1288 = vmul.f32 %v1256, %v267
    %v1289 = vmul.f32 %v1260, %v268
    %v1290 = vmul.f32 %v1264, %v269
    %v1291 = vmul.f32 %v1268, %v270
    %v1292 = vmul.f32 %v1272, %v271
    %v1293 = vmul.f32 %v1276, %v272
    %v1294 = vmax.f32 %v1278, %v1282
    %v1295 = vmax.f32 %v1279, %v1283
    %v1296 = vmax.f32 %v1280, %v1284
    %v1297 = vmax.f32 %v1281, %v1285
    %v1298 = vmax.f32 %v1294, %v1286
    %v1299 = vmax.f32 %v1295, %v1287
    %v1300 = vmax.f32 %v1296, %v1288
    %v1301 = vmax.f32 %v1297, %v1289
    %v1302 = vmax.f32 %v1298, %v1290
    %v1303 = vmax.f32 %v1299, %v1291
    %v1304 = vmax.f32 %v1300, %v1292
    %v1305 = vmax.f32 %v1301, %v1293
    %v1306 = vmax.f32 %v1302, %v1303
    %v1307 = vmax.f32 %v1304, %v1305
    %v1308 = vmax.f32 %v1306, %v1307
    %v1309 = vrot.slane %v1308, 4
    %v1310 = vmax.f32 %v1308, %v1309
    %v1311 = vrot.slane %v1310, 2
    %v1312 = vmax.f32 %v1310, %v1311
    %v1313 = vrot.slane %v1312, 1
    %v1314 = vmax.f32 %v1312, %v1313
    %1315 = vset.pattern.permute.xlu0 10
    %1316 = vperm.xlu0 %1315, %v273
    %v1317 = vpop.permute.xlu0 %1316
    %1319 = vset.pattern.permute.xlu0 10
    %1320 = vperm.xlu0 %1319, %v274
    %v1321 = vpop.permute.xlu0 %1320
    %1323 = vset.pattern.permute.xlu0 10
    %1324 = vperm.xlu0 %1323, %v275
    %v1325 = vpop.permute.xlu0 %1324
    %1327 = vset.pattern.permute.xlu0 10
    %1328 = vperm.xlu0 %1327, %v276
    %v1329 = vpop.permute.xlu0 %1328
    %1331 = vset.pattern.permute.xlu0 10
    %1332 = vperm.xlu0 %1331, %v277
    %v1333 = vpop.permute.xlu0 %1332
    %1335 = vset.pattern.permute.xlu0 10
    %1336 = vperm.xlu0 %1335, %v278
    %v1337 = vpop.permute.xlu0 %1336
    %1339 = vset.pattern.permute.xlu0 10
    %1340 = vperm.xlu0 %1339, %v279
    %v1341 = vpop.permute.xlu0 %1340
    %1343 = vset.pattern.permute.xlu0 10
    %1344 = vperm.xlu0 %1343, %v280
    %v1345 = vpop.permute.xlu0 %1344
    %1347 = vset.pattern.permute.xlu0 10
    %1348 = vperm.xlu0 %1347, %v281
    %v1349 = vpop.permute.xlu0 %1348
    %1351 = vset.pattern.permute.xlu0 10
    %1352 = vperm.xlu0 %1351, %v282
    %v1353 = vpop.permute.xlu0 %1352
    %1355 = vset.pattern.permute.xlu0 10
    %1356 = vperm.xlu0 %1355, %v283
    %v1357 = vpop.permute.xlu0 %1356
    %1359 = vset.pattern.permute.xlu0 10
    %1360 = vperm.xlu0 %1359, %v284
    %v1361 = vpop.permute.xlu0 %1360
    %1363 = vset.pattern.permute.xlu0 10
    %1364 = vperm.xlu0 %1363, %v285
    %v1365 = vpop.permute.xlu0 %1364
    %1367 = vset.pattern.permute.xlu0 10
    %1368 = vperm.xlu0 %1367, %v286
    %v1369 = vpop.permute.xlu0 %1368
    %1371 = vset.pattern.permute.xlu0 10
    %1372 = vperm.xlu0 %1371, %v287
    %v1373 = vpop.permute.xlu0 %1372
    %1375 = vset.pattern.permute.xlu0 10
    %1376 = vperm.xlu0 %1375, %v288
    %v1377 = vpop.permute.xlu0 %1376
    %v1379 = vmul.f32 %v1317, %v257
    %v1380 = vmul.f32 %v1321, %v258
    %v1381 = vmul.f32 %v1325, %v259
    %v1382 = vmul.f32 %v1329, %v260
    %v1383 = vmul.f32 %v1333, %v261
    %v1384 = vmul.f32 %v1337, %v262
    %v1385 = vmul.f32 %v1341, %v263
    %v1386 = vmul.f32 %v1345, %v264
    %v1387 = vmul.f32 %v1349, %v265
    %v1388 = vmul.f32 %v1353, %v266
    %v1389 = vmul.f32 %v1357, %v267
    %v1390 = vmul.f32 %v1361, %v268
    %v1391 = vmul.f32 %v1365, %v269
    %v1392 = vmul.f32 %v1369, %v270
    %v1393 = vmul.f32 %v1373, %v271
    %v1394 = vmul.f32 %v1377, %v272
    %v1395 = vmax.f32 %v1379, %v1383
    %v1396 = vmax.f32 %v1380, %v1384
    %v1397 = vmax.f32 %v1381, %v1385
    %v1398 = vmax.f32 %v1382, %v1386
    %v1399 = vmax.f32 %v1395, %v1387
    %v1400 = vmax.f32 %v1396, %v1388
    %v1401 = vmax.f32 %v1397, %v1389
    %v1402 = vmax.f32 %v1398, %v1390
    %v1403 = vmax.f32 %v1399, %v1391
    %v1404 = vmax.f32 %v1400, %v1392
    %v1405 = vmax.f32 %v1401, %v1393
    %v1406 = vmax.f32 %v1402, %v1394
    %v1407 = vmax.f32 %v1403, %v1404
    %v1408 = vmax.f32 %v1405, %v1406
    %v1409 = vmax.f32 %v1407, %v1408
    %v1410 = vrot.slane %v1409, 4
    %v1411 = vmax.f32 %v1409, %v1410
    %v1412 = vrot.slane %v1411, 2
    %v1413 = vmax.f32 %v1411, %v1412
    %v1414 = vrot.slane %v1413, 1
    %v1415 = vmax.f32 %v1413, %v1414
    %1416 = vset.pattern.permute.xlu0 11
    %1417 = vperm.xlu0 %1416, %v273
    %v1418 = vpop.permute.xlu0 %1417
    %1420 = vset.pattern.permute.xlu0 11
    %1421 = vperm.xlu0 %1420, %v274
    %v1422 = vpop.permute.xlu0 %1421
    %1424 = vset.pattern.permute.xlu0 11
    %1425 = vperm.xlu0 %1424, %v275
    %v1426 = vpop.permute.xlu0 %1425
    %1428 = vset.pattern.permute.xlu0 11
    %1429 = vperm.xlu0 %1428, %v276
    %v1430 = vpop.permute.xlu0 %1429
    %1432 = vset.pattern.permute.xlu0 11
    %1433 = vperm.xlu0 %1432, %v277
    %v1434 = vpop.permute.xlu0 %1433
    %1436 = vset.pattern.permute.xlu0 11
    %1437 = vperm.xlu0 %1436, %v278
    %v1438 = vpop.permute.xlu0 %1437
    %1440 = vset.pattern.permute.xlu0 11
    %1441 = vperm.xlu0 %1440, %v279
    %v1442 = vpop.permute.xlu0 %1441
    %1444 = vset.pattern.permute.xlu0 11
    %1445 = vperm.xlu0 %1444, %v280
    %v1446 = vpop.permute.xlu0 %1445
    %1448 = vset.pattern.permute.xlu0 11
    %1449 = vperm.xlu0 %1448, %v281
    %v1450 = vpop.permute.xlu0 %1449
    %1452 = vset.pattern.permute.xlu0 11
    %1453 = vperm.xlu0 %1452, %v282
    %v1454 = vpop.permute.xlu0 %1453
    %1456 = vset.pattern.permute.xlu0 11
    %1457 = vperm.xlu0 %1456, %v283
    %v1458 = vpop.permute.xlu0 %1457
    %1460 = vset.pattern.permute.xlu0 11
    %1461 = vperm.xlu0 %1460, %v284
    %v1462 = vpop.permute.xlu0 %1461
    %1464 = vset.pattern.permute.xlu0 11
    %1465 = vperm.xlu0 %1464, %v285
    %v1466 = vpop.permute.xlu0 %1465
    %1468 = vset.pattern.permute.xlu0 11
    %1469 = vperm.xlu0 %1468, %v286
    %v1470 = vpop.permute.xlu0 %1469
    %1472 = vset.pattern.permute.xlu0 11
    %1473 = vperm.xlu0 %1472, %v287
    %v1474 = vpop.permute.xlu0 %1473
    %1476 = vset.pattern.permute.xlu0 11
    %1477 = vperm.xlu0 %1476, %v288
    %v1478 = vpop.permute.xlu0 %1477
    %v1480 = vmul.f32 %v1418, %v257
    %v1481 = vmul.f32 %v1422, %v258
    %v1482 = vmul.f32 %v1426, %v259
    %v1483 = vmul.f32 %v1430, %v260
    %v1484 = vmul.f32 %v1434, %v261
    %v1485 = vmul.f32 %v1438, %v262
    %v1486 = vmul.f32 %v1442, %v263
    %v1487 = vmul.f32 %v1446, %v264
    %v1488 = vmul.f32 %v1450, %v265
    %v1489 = vmul.f32 %v1454, %v266
    %v1490 = vmul.f32 %v1458, %v267
    %v1491 = vmul.f32 %v1462, %v268
    %v1492 = vmul.f32 %v1466, %v269
    %v1493 = vmul.f32 %v1470, %v270
    %v1494 = vmul.f32 %v1474, %v271
    %v1495 = vmul.f32 %v1478, %v272
    %v1496 = vmax.f32 %v1480, %v1484
    %v1497 = vmax.f32 %v1481, %v1485
    %v1498 = vmax.f32 %v1482, %v1486
    %v1499 = vmax.f32 %v1483, %v1487
    %v1500 = vmax.f32 %v1496, %v1488
    %v1501 = vmax.f32 %v1497, %v1489
    %v1502 = vmax.f32 %v1498, %v1490
    %v1503 = vmax.f32 %v1499, %v1491
    %v1504 = vmax.f32 %v1500, %v1492
    %v1505 = vmax.f32 %v1501, %v1493
    %v1506 = vmax.f32 %v1502, %v1494
    %v1507 = vmax.f32 %v1503, %v1495
    %v1508 = vmax.f32 %v1504, %v1505
    %v1509 = vmax.f32 %v1506, %v1507
    %v1510 = vmax.f32 %v1508, %v1509
    %v1511 = vrot.slane %v1510, 4
    %v1512 = vmax.f32 %v1510, %v1511
    %v1513 = vrot.slane %v1512, 2
    %v1514 = vmax.f32 %v1512, %v1513
    %v1515 = vrot.slane %v1514, 1
    %v1516 = vmax.f32 %v1514, %v1515
    %1517 = vset.pattern.permute.xlu0 12
    %1518 = vperm.xlu0 %1517, %v273
    %v1519 = vpop.permute.xlu0 %1518
    %1521 = vset.pattern.permute.xlu0 12
    %1522 = vperm.xlu0 %1521, %v274
    %v1523 = vpop.permute.xlu0 %1522
    %1525 = vset.pattern.permute.xlu0 12
    %1526 = vperm.xlu0 %1525, %v275
    %v1527 = vpop.permute.xlu0 %1526
    %1529 = vset.pattern.permute.xlu0 12
    %1530 = vperm.xlu0 %1529, %v276
    %v1531 = vpop.permute.xlu0 %1530
    %1533 = vset.pattern.permute.xlu0 12
    %1534 = vperm.xlu0 %1533, %v277
    %v1535 = vpop.permute.xlu0 %1534
    %1537 = vset.pattern.permute.xlu0 12
    %1538 = vperm.xlu0 %1537, %v278
    %v1539 = vpop.permute.xlu0 %1538
    %1541 = vset.pattern.permute.xlu0 12
    %1542 = vperm.xlu0 %1541, %v279
    %v1543 = vpop.permute.xlu0 %1542
    %1545 = vset.pattern.permute.xlu0 12
    %1546 = vperm.xlu0 %1545, %v280
    %v1547 = vpop.permute.xlu0 %1546
    %1549 = vset.pattern.permute.xlu0 12
    %1550 = vperm.xlu0 %1549, %v281
    %v1551 = vpop.permute.xlu0 %1550
    %1553 = vset.pattern.permute.xlu0 12
    %1554 = vperm.xlu0 %1553, %v282
    %v1555 = vpop.permute.xlu0 %1554
    %1557 = vset.pattern.permute.xlu0 12
    %1558 = vperm.xlu0 %1557, %v283
    %v1559 = vpop.permute.xlu0 %1558
    %1561 = vset.pattern.permute.xlu0 12
    %1562 = vperm.xlu0 %1561, %v284
    %v1563 = vpop.permute.xlu0 %1562
    %1565 = vset.pattern.permute.xlu0 12
    %1566 = vperm.xlu0 %1565, %v285
    %v1567 = vpop.permute.xlu0 %1566
    %1569 = vset.pattern.permute.xlu0 12
    %1570 = vperm.xlu0 %1569, %v286
    %v1571 = vpop.permute.xlu0 %1570
    %1573 = vset.pattern.permute.xlu0 12
    %1574 = vperm.xlu0 %1573, %v287
    %v1575 = vpop.permute.xlu0 %1574
    %1577 = vset.pattern.permute.xlu0 12
    %1578 = vperm.xlu0 %1577, %v288
    %v1579 = vpop.permute.xlu0 %1578
    %v1581 = vmul.f32 %v1519, %v257
    %v1582 = vmul.f32 %v1523, %v258
    %v1583 = vmul.f32 %v1527, %v259
    %v1584 = vmul.f32 %v1531, %v260
    %v1585 = vmul.f32 %v1535, %v261
    %v1586 = vmul.f32 %v1539, %v262
    %v1587 = vmul.f32 %v1543, %v263
    %v1588 = vmul.f32 %v1547, %v264
    %v1589 = vmul.f32 %v1551, %v265
    %v1590 = vmul.f32 %v1555, %v266
    %v1591 = vmul.f32 %v1559, %v267
    %v1592 = vmul.f32 %v1563, %v268
    %v1593 = vmul.f32 %v1567, %v269
    %v1594 = vmul.f32 %v1571, %v270
    %v1595 = vmul.f32 %v1575, %v271
    %v1596 = vmul.f32 %v1579, %v272
    %v1597 = vmax.f32 %v1581, %v1585
    %v1598 = vmax.f32 %v1582, %v1586
    %v1599 = vmax.f32 %v1583, %v1587
    %v1600 = vmax.f32 %v1584, %v1588
    %v1601 = vmax.f32 %v1597, %v1589
    %v1602 = vmax.f32 %v1598, %v1590
    %v1603 = vmax.f32 %v1599, %v1591
    %v1604 = vmax.f32 %v1600, %v1592
    %v1605 = vmax.f32 %v1601, %v1593
    %v1606 = vmax.f32 %v1602, %v1594
    %v1607 = vmax.f32 %v1603, %v1595
    %v1608 = vmax.f32 %v1604, %v1596
    %v1609 = vmax.f32 %v1605, %v1606
    %v1610 = vmax.f32 %v1607, %v1608
    %v1611 = vmax.f32 %v1609, %v1610
    %v1612 = vrot.slane %v1611, 4
    %v1613 = vmax.f32 %v1611, %v1612
    %v1614 = vrot.slane %v1613, 2
    %v1615 = vmax.f32 %v1613, %v1614
    %v1616 = vrot.slane %v1615, 1
    %v1617 = vmax.f32 %v1615, %v1616
    %1618 = vset.pattern.permute.xlu0 13
    %1619 = vperm.xlu0 %1618, %v273
    %v1620 = vpop.permute.xlu0 %1619
    %1622 = vset.pattern.permute.xlu0 13
    %1623 = vperm.xlu0 %1622, %v274
    %v1624 = vpop.permute.xlu0 %1623
    %1626 = vset.pattern.permute.xlu0 13
    %1627 = vperm.xlu0 %1626, %v275
    %v1628 = vpop.permute.xlu0 %1627
    %1630 = vset.pattern.permute.xlu0 13
    %1631 = vperm.xlu0 %1630, %v276
    %v1632 = vpop.permute.xlu0 %1631
    %1634 = vset.pattern.permute.xlu0 13
    %1635 = vperm.xlu0 %1634, %v277
    %v1636 = vpop.permute.xlu0 %1635
    %1638 = vset.pattern.permute.xlu0 13
    %1639 = vperm.xlu0 %1638, %v278
    %v1640 = vpop.permute.xlu0 %1639
    %1642 = vset.pattern.permute.xlu0 13
    %1643 = vperm.xlu0 %1642, %v279
    %v1644 = vpop.permute.xlu0 %1643
    %1646 = vset.pattern.permute.xlu0 13
    %1647 = vperm.xlu0 %1646, %v280
    %v1648 = vpop.permute.xlu0 %1647
    %1650 = vset.pattern.permute.xlu0 13
    %1651 = vperm.xlu0 %1650, %v281
    %v1652 = vpop.permute.xlu0 %1651
    %1654 = vset.pattern.permute.xlu0 13
    %1655 = vperm.xlu0 %1654, %v282
    %v1656 = vpop.permute.xlu0 %1655
    %1658 = vset.pattern.permute.xlu0 13
    %1659 = vperm.xlu0 %1658, %v283
    %v1660 = vpop.permute.xlu0 %1659
    %1662 = vset.pattern.permute.xlu0 13
    %1663 = vperm.xlu0 %1662, %v284
    %v1664 = vpop.permute.xlu0 %1663
    %1666 = vset.pattern.permute.xlu0 13
    %1667 = vperm.xlu0 %1666, %v285
    %v1668 = vpop.permute.xlu0 %1667
    %1670 = vset.pattern.permute.xlu0 13
    %1671 = vperm.xlu0 %1670, %v286
    %v1672 = vpop.permute.xlu0 %1671
    %1674 = vset.pattern.permute.xlu0 13
    %1675 = vperm.xlu0 %1674, %v287
    %v1676 = vpop.permute.xlu0 %1675
    %1678 = vset.pattern.permute.xlu0 13
    %1679 = vperm.xlu0 %1678, %v288
    %v1680 = vpop.permute.xlu0 %1679
    %v1682 = vmul.f32 %v1620, %v257
    %v1683 = vmul.f32 %v1624, %v258
    %v1684 = vmul.f32 %v1628, %v259
    %v1685 = vmul.f32 %v1632, %v260
    %v1686 = vmul.f32 %v1636, %v261
    %v1687 = vmul.f32 %v1640, %v262
    %v1688 = vmul.f32 %v1644, %v263
    %v1689 = vmul.f32 %v1648, %v264
    %v1690 = vmul.f32 %v1652, %v265
    %v1691 = vmul.f32 %v1656, %v266
    %v1692 = vmul.f32 %v1660, %v267
    %v1693 = vmul.f32 %v1664, %v268
    %v1694 = vmul.f32 %v1668, %v269
    %v1695 = vmul.f32 %v1672, %v270
    %v1696 = vmul.f32 %v1676, %v271
    %v1697 = vmul.f32 %v1680, %v272
    %v1698 = vmax.f32 %v1682, %v1686
    %v1699 = vmax.f32 %v1683, %v1687
    %v1700 = vmax.f32 %v1684, %v1688
    %v1701 = vmax.f32 %v1685, %v1689
    %v1702 = vmax.f32 %v1698, %v1690
    %v1703 = vmax.f32 %v1699, %v1691
    %v1704 = vmax.f32 %v1700, %v1692
    %v1705 = vmax.f32 %v1701, %v1693
    %v1706 = vmax.f32 %v1702, %v1694
    %v1707 = vmax.f32 %v1703, %v1695
    %v1708 = vmax.f32 %v1704, %v1696
    %v1709 = vmax.f32 %v1705, %v1697
    %v1710 = vmax.f32 %v1706, %v1707
    %v1711 = vmax.f32 %v1708, %v1709
    %v1712 = vmax.f32 %v1710, %v1711
    %v1713 = vrot.slane %v1712, 4
    %v1714 = vmax.f32 %v1712, %v1713
    %v1715 = vrot.slane %v1714, 2
    %v1716 = vmax.f32 %v1714, %v1715
    %v1717 = vrot.slane %v1716, 1
    %v1718 = vmax.f32 %v1716, %v1717
    %1719 = vset.pattern.permute.xlu0 14
    %1720 = vperm.xlu0 %1719, %v273
    %v1721 = vpop.permute.xlu0 %1720
    %1723 = vset.pattern.permute.xlu0 14
    %1724 = vperm.xlu0 %1723, %v274
    %v1725 = vpop.permute.xlu0 %1724
    %1727 = vset.pattern.permute.xlu0 14
    %1728 = vperm.xlu0 %1727, %v275
    %v1729 = vpop.permute.xlu0 %1728
    %1731 = vset.pattern.permute.xlu0 14
    %1732 = vperm.xlu0 %1731, %v276
    %v1733 = vpop.permute.xlu0 %1732
    %1735 = vset.pattern.permute.xlu0 14
    %1736 = vperm.xlu0 %1735, %v277
    %v1737 = vpop.permute.xlu0 %1736
    %1739 = vset.pattern.permute.xlu0 14
    %1740 = vperm.xlu0 %1739, %v278
    %v1741 = vpop.permute.xlu0 %1740
    %1743 = vset.pattern.permute.xlu0 14
    %1744 = vperm.xlu0 %1743, %v279
    %v1745 = vpop.permute.xlu0 %1744
    %1747 = vset.pattern.permute.xlu0 14
    %1748 = vperm.xlu0 %1747, %v280
    %v1749 = vpop.permute.xlu0 %1748
    %1751 = vset.pattern.permute.xlu0 14
    %1752 = vperm.xlu0 %1751, %v281
    %v1753 = vpop.permute.xlu0 %1752
    %1755 = vset.pattern.permute.xlu0 14
    %1756 = vperm.xlu0 %1755, %v282
    %v1757 = vpop.permute.xlu0 %1756
    %1759 = vset.pattern.permute.xlu0 14
    %1760 = vperm.xlu0 %1759, %v283
    %v1761 = vpop.permute.xlu0 %1760
    %1763 = vset.pattern.permute.xlu0 14
    %1764 = vperm.xlu0 %1763, %v284
    %v1765 = vpop.permute.xlu0 %1764
    %1767 = vset.pattern.permute.xlu0 14
    %1768 = vperm.xlu0 %1767, %v285
    %v1769 = vpop.permute.xlu0 %1768
    %1771 = vset.pattern.permute.xlu0 14
    %1772 = vperm.xlu0 %1771, %v286
    %v1773 = vpop.permute.xlu0 %1772
    %1775 = vset.pattern.permute.xlu0 14
    %1776 = vperm.xlu0 %1775, %v287
    %v1777 = vpop.permute.xlu0 %1776
    %1779 = vset.pattern.permute.xlu0 14
    %1780 = vperm.xlu0 %1779, %v288
    %v1781 = vpop.permute.xlu0 %1780
    %v1783 = vmul.f32 %v1721, %v257
    %v1784 = vmul.f32 %v1725, %v258
    %v1785 = vmul.f32 %v1729, %v259
    %v1786 = vmul.f32 %v1733, %v260
    %v1787 = vmul.f32 %v1737, %v261
    %v1788 = vmul.f32 %v1741, %v262
    %v1789 = vmul.f32 %v1745, %v263
    %v1790 = vmul.f32 %v1749, %v264
    %v1791 = vmul.f32 %v1753, %v265
    %v1792 = vmul.f32 %v1757, %v266
    %v1793 = vmul.f32 %v1761, %v267
    %v1794 = vmul.f32 %v1765, %v268
    %v1795 = vmul.f32 %v1769, %v269
    %v1796 = vmul.f32 %v1773, %v270
    %v1797 = vmul.f32 %v1777, %v271
    %v1798 = vmul.f32 %v1781, %v272
    %v1799 = vmax.f32 %v1783, %v1787
    %v1800 = vmax.f32 %v1784, %v1788
    %v1801 = vmax.f32 %v1785, %v1789
    %v1802 = vmax.f32 %v1786, %v1790
    %v1803 = vmax.f32 %v1799, %v1791
    %v1804 = vmax.f32 %v1800, %v1792
    %v1805 = vmax.f32 %v1801, %v1793
    %v1806 = vmax.f32 %v1802, %v1794
    %v1807 = vmax.f32 %v1803, %v1795
    %v1808 = vmax.f32 %v1804, %v1796
    %v1809 = vmax.f32 %v1805, %v1797
    %v1810 = vmax.f32 %v1806, %v1798
    %v1811 = vmax.f32 %v1807, %v1808
    %v1812 = vmax.f32 %v1809, %v1810
    %v1813 = vmax.f32 %v1811, %v1812
    %v1814 = vrot.slane %v1813, 4
    %v1815 = vmax.f32 %v1813, %v1814
    %v1816 = vrot.slane %v1815, 2
    %v1817 = vmax.f32 %v1815, %v1816
    %v1818 = vrot.slane %v1817, 1
    %v1819 = vmax.f32 %v1817, %v1818
    %1820 = vset.pattern.permute.xlu0 15
    %1821 = vperm.xlu0 %1820, %v273
    %v1822 = vpop.permute.xlu0 %1821
    %1824 = vset.pattern.permute.xlu0 15
    %1825 = vperm.xlu0 %1824, %v274
    %v1826 = vpop.permute.xlu0 %1825
    %1828 = vset.pattern.permute.xlu0 15
    %1829 = vperm.xlu0 %1828, %v275
    %v1830 = vpop.permute.xlu0 %1829
    %1832 = vset.pattern.permute.xlu0 15
    %1833 = vperm.xlu0 %1832, %v276
    %v1834 = vpop.permute.xlu0 %1833
    %1836 = vset.pattern.permute.xlu0 15
    %1837 = vperm.xlu0 %1836, %v277
    %v1838 = vpop.permute.xlu0 %1837
    %1840 = vset.pattern.permute.xlu0 15
    %1841 = vperm.xlu0 %1840, %v278
    %v1842 = vpop.permute.xlu0 %1841
    %1844 = vset.pattern.permute.xlu0 15
    %1845 = vperm.xlu0 %1844, %v279
    %v1846 = vpop.permute.xlu0 %1845
    %1848 = vset.pattern.permute.xlu0 15
    %1849 = vperm.xlu0 %1848, %v280
    %v1850 = vpop.permute.xlu0 %1849
    %1852 = vset.pattern.permute.xlu0 15
    %1853 = vperm.xlu0 %1852, %v281
    %v1854 = vpop.permute.xlu0 %1853
    %1856 = vset.pattern.permute.xlu0 15
    %1857 = vperm.xlu0 %1856, %v282
    %v1858 = vpop.permute.xlu0 %1857
    %1860 = vset.pattern.permute.xlu0 15
    %1861 = vperm.xlu0 %1860, %v283
    %v1862 = vpop.permute.xlu0 %1861
    %1864 = vset.pattern.permute.xlu0 15
    %1865 = vperm.xlu0 %1864, %v284
    %v1866 = vpop.permute.xlu0 %1865
    %1868 = vset.pattern.permute.xlu0 15
    %1869 = vperm.xlu0 %1868, %v285
    %v1870 = vpop.permute.xlu0 %1869
    %1872 = vset.pattern.permute.xlu0 15
    %1873 = vperm.xlu0 %1872, %v286
    %v1874 = vpop.permute.xlu0 %1873
    %1876 = vset.pattern.permute.xlu0 15
    %1877 = vperm.xlu0 %1876, %v287
    %v1878 = vpop.permute.xlu0 %1877
    %1880 = vset.pattern.permute.xlu0 15
    %1881 = vperm.xlu0 %1880, %v288
    %v1882 = vpop.permute.xlu0 %1881
    %v1884 = vmul.f32 %v1822, %v257
    %v1885 = vmul.f32 %v1826, %v258
    %v1886 = vmul.f32 %v1830, %v259
    %v1887 = vmul.f32 %v1834, %v260
    %v1888 = vmul.f32 %v1838, %v261
    %v1889 = vmul.f32 %v1842, %v262
    %v1890 = vmul.f32 %v1846, %v263
    %v1891 = vmul.f32 %v1850, %v264
    %v1892 = vmul.f32 %v1854, %v265
    %v1893 = vmul.f32 %v1858, %v266
    %v1894 = vmul.f32 %v1862, %v267
    %v1895 = vmul.f32 %v1866, %v268
    %v1896 = vmul.f32 %v1870, %v269
    %v1897 = vmul.f32 %v1874, %v270
    %v1898 = vmul.f32 %v1878, %v271
    %v1899 = vmul.f32 %v1882, %v272
    %v1900 = vmax.f32 %v1884, %v1888
    %v1901 = vmax.f32 %v1885, %v1889
    %v1902 = vmax.f32 %v1886, %v1890
    %v1903 = vmax.f32 %v1887, %v1891
    %v1904 = vmax.f32 %v1900, %v1892
    %v1905 = vmax.f32 %v1901, %v1893
    %v1906 = vmax.f32 %v1902, %v1894
    %v1907 = vmax.f32 %v1903, %v1895
    %v1908 = vmax.f32 %v1904, %v1896
    %v1909 = vmax.f32 %v1905, %v1897
    %v1910 = vmax.f32 %v1906, %v1898
    %v1911 = vmax.f32 %v1907, %v1899
    %v1912 = vmax.f32 %v1908, %v1909
    %v1913 = vmax.f32 %v1910, %v1911
    %v1914 = vmax.f32 %v1912, %v1913
    %v1915 = vrot.slane %v1914, 4
    %v1916 = vmax.f32 %v1914, %v1915
    %v1917 = vrot.slane %v1916, 2
    %v1918 = vmax.f32 %v1916, %v1917
    %v1919 = vrot.slane %v1918, 1
    %v1920 = vmax.f32 %v1918, %v1919
    %vm1921 = vcmask 1040384
    %v1922 = vsel %vm1921, %v405, %v506
    %vm1923 = vcmask 1041408
    %v1924 = vsel %vm1923, %v1922, %v607
    %vm1925 = vcmask 1042432
    %v1926 = vsel %vm1925, %v1924, %v708
    %vm1927 = vcmask 1043456
    %v1928 = vsel %vm1927, %v1926, %v809
    %vm1929 = vcmask 1044480
    %v1930 = vsel %vm1929, %v1928, %v910
    %vm1931 = vcmask 1045504
    %v1932 = vsel %vm1931, %v1930, %v1011
    %vm1933 = vcmask 1046528
    %v1934 = vsel %vm1933, %v1932, %v1112
    %v1935 = vsel %vm1921, %v1213, %v1314
    %v1936 = vsel %vm1923, %v1935, %v1415
    %v1937 = vsel %vm1925, %v1936, %v1516
    %v1938 = vsel %vm1927, %v1937, %v1617
    %v1939 = vsel %vm1929, %v1938, %v1718
    %v1940 = vsel %vm1931, %v1939, %v1819
    %v1941 = vsel %vm1933, %v1940, %v1920
    %v1942 = vld [vmem:[#allocation2] sm:$0xff]
    %v1943 = vld [vmem:[#allocation2 + $0x8] sm:$0xff]
    %v1944 = vmax.f32 %v1942, %v1934
    %v1945 = vmax.f32 %v1943, %v1941
    %1946 = vst [vmem:[#allocation2] sm:$0xff] %v1944
    %1947 = vst [vmem:[#allocation2 + $0x8] sm:$0xff] %v1945
    // Predicated region
    $region22: #{tpu_custom_call.1} parent=1 // pred_check
      %p1948 = pneg %p19
    $region23: #{tpu_custom_call.1} parent=1 // pred_check_branch
      %1950 = sbr.rel (%p1948) target = $region25
    $region24: #{tpu_custom_call.1} parent=1 // pred_region
      %v1951 = vld [vmem:[#allocation2] sm:$0xff]
      %v1952 = vld [vmem:[#allocation2 + $0x8] sm:$0xff]
      %1953 = vst [vmem:[#allocation3] sm:$0xff] %v1951
      %1954 = vst [vmem:[#allocation3 + $0x8] sm:$0xff] %v1952
    $region25: #{tpu_custom_call.1} parent=1 // pred_fallthru
      _
    // Predicated region
    $region26: #{tpu_custom_call.1} parent=1 // pred_check
      _
    $region27: #{tpu_custom_call.1} parent=1 // pred_check_branch
      %1956 = sbr.rel (0) target = $region29
    $region28: #{tpu_custom_call.1} parent=1 // pred_region
      %s1958 = ssub.s32 256, 256
      %1959 = vsyncadd [#allocation4], %s1958
      %s1960 = sshll.u32 [#allocation3], 4
      %s1961 = int_to_ptr.vmem [resolvable:$true] %s1960
      %1966 = dma.vmem_to_hbm [thread:$0]  %s1961, 256, %s4, [#allocation4], 128, 128, 8
    $region29: #{tpu_custom_call.1} parent=1 // pred_fallthru
      _
    // Predicated region
    $region30: #{tpu_custom_call.1} parent=1 // pred_check
      _
    $region31: #{tpu_custom_call.1} parent=1 // pred_check_branch
      %1968 = sbr.rel (0) target = $region33
    $region32: #{tpu_custom_call.1} parent=1 // pred_region
      %1969 = dma.done [#allocation4], 256
    $region33: #{tpu_custom_call.1} parent=1 // pred_fallthru
      _
    %1970 = vsyncpa [#allocation4], 1

</llo_original>
